<compile_context>
chip_gen: v7x
topology: tpu7x:2x2x1
jax: 0.10.0
libtpu: 0.0.40
codegen_flags: <defaults>
</compile_context>

<pallas_src>
import numpy as np
import jax
import jax.numpy as jnp
from jax import lax
from jax.experimental import pallas as pl
from jax.experimental.pallas import tpu as pltpu


def clip_loss_kernel(img_ref, txt_ref,                        # inputs  (bf16 tiles)
                     logits_ref, img_loss_ref, txt_loss_ref,  # outputs
                     m_row, l_row, d_row, m_col, l_col, d_col):  # VMEM scratch
    i = pl.program_id(0)            # image (row) tile index
    j = pl.program_id(1)            # text  (col) tile index, inner axis
    nI = pl.num_programs(0)
    nJ = pl.num_programs(1)

    # ---- init accumulators --------------------------------------------------
    @pl.when(j == 0)
    def _():                                    # per-row-tile stats (reset per i)
        m_row[...] = jnp.full_like(m_row, -jnp.inf)
        l_row[...] = jnp.zeros_like(l_row)

    @pl.when(jnp.logical_and(i == 0, j == 0))
    def _():                                    # per-column stats (persist over i)
        m_col[...] = jnp.full_like(m_col, -jnp.inf)
        l_col[...] = jnp.zeros_like(l_col)

    # ---- similarity tile on the MXU (bf16 x bf16 -> f32 accumulate) ---------
    a = img_ref[...]                # (T, D) bf16, already scaled by logit_scale
    b = txt_ref[...]                # (T, D) bf16
    s = lax.dot_general(a, b, (((1,), (1,)), ((), ())),
                        preferred_element_type=jnp.float32)   # (T, T) f32
    logits_ref[...] = s

    # ---- diagonal ("correct" logit for label k == k), diagonal tiles only ---
    # Extracted from the logits tile itself so the losses are exactly
    # consistent with the emitted logits; masked reduce along lanes gives the
    # row orientation, masked reduce along sublanes gives the lane orientation
    # (avoids a (T,1)->(1,T) relayout).
    @pl.when(i == j)
    def _():
        ids_r = lax.broadcasted_iota(jnp.int32, s.shape, 0)
        ids_c = lax.broadcasted_iota(jnp.int32, s.shape, 1)
        on_diag = ids_r == ids_c
        masked = jnp.where(on_diag, s, 0.0)
        d_row[...] = jnp.sum(masked, axis=-1, keepdims=True)         # (T, 1)
        d_col[i] = jnp.sum(masked, axis=0, keepdims=True)            # (1, T)

    # ---- online row (image) LSE: the single big exp of this tile ------------
    m_prev = m_row[...]                                              # (T, 1)
    m_new = jnp.maximum(m_prev, jnp.max(s, axis=-1, keepdims=True))  # (T, 1)
    p = jnp.exp(s - m_new)                                           # (T, T)
    l_row[...] = (jnp.exp(m_prev - m_new) * l_row[...]
                  + jnp.sum(p, axis=-1, keepdims=True))
    m_row[...] = m_new

    # ---- online column (text) LSE reusing the same exp ----------------------
    # csum[c] = sum_r exp(s[r,c] - k) with k = max over the tile; exact reuse
    # of p via per-row weights exp(m_new - k).  (Assumes per-tile logit spread
    # stays within float32 exp range, which holds for CLIP-normalized features.)
    k = jnp.max(m_new, axis=0, keepdims=True)                        # (1, 1)
    w = jnp.exp(m_new - k)                                           # (T, 1)
    csum = jnp.sum(p * w, axis=0, keepdims=True)                     # (1, T)
    mc_prev = m_col[j]                                               # (1, T)
    mc_new = jnp.maximum(mc_prev, k)                                 # (1, T)
    l_col[j] = jnp.exp(mc_prev - mc_new) * l_col[j] + csum * jnp.exp(k - mc_new)
    m_col[j] = mc_new

    # ---- finalize ------------------------------------------------------------
    @pl.when(j == nJ - 1)
    def _():
        img_loss_ref[...] = m_row[...] + jnp.log(l_row[...]) - d_row[...]   # (T,1)

    @pl.when(i == nI - 1)
    def _():
        txt_loss_ref[j] = m_col[j] + jnp.log(l_col[j]) - d_col[j]           # (1,T)


def clip_loss(image_features, text_features, logit_scale, *, block=None):
    """Pallas equivalent of ClipLoss.forward.

    image_features, text_features: [N, D]; logit_scale: scalar.
    Returns (image_loss [N], text_loss [N], logits_per_image [N, N] f32).
    """
    N, D = image_features.shape
    assert text_features.shape == (N, D)
    if block is None:
        # 256-aligned tiles for v6e/v7x MXU; pass block=128 for v5e.
        block = next((t for t in (256, 128) if N % t == 0), N)
    # TODO(synk): N not divisible by the tile size falls back to one monolithic
    # tile; proper fix is padding + (-inf) masking of the pad region.
    assert N % block == 0, "N must be divisible by the tile size"
    nI = N // block

    # Fold logit_scale into the image features; this rides the bf16 cast that
    # is needed anyway for MXU rate, so it costs one fused O(N*D) pass.
    scale = jnp.asarray(logit_scale, jnp.float32)
    img = (image_features.astype(jnp.float32) * scale).astype(jnp.bfloat16)
    txt = text_features.astype(jnp.bfloat16)

    out_shapes = (
        jax.ShapeDtypeStruct((N, N), jnp.float32),          # logits_per_image
        jax.ShapeDtypeStruct((N, 1), jnp.float32),          # image_loss
        jax.ShapeDtypeStruct((nI, 1, block), jnp.float32),  # text_loss (lane-dense)
    )

    # TODO(synk): on v7x (2 TCs) the row axis could be made "parallel" by
    # emitting per-row-tile column partial (m, l) outputs and combining outside.
    logits, img_loss, txt_loss = pl.pallas_call(
        clip_loss_kernel,
        out_shape=out_shapes,
        grid=(nI, nI),
        in_specs=[
            pl.BlockSpec((block, D), lambda i, j: (i, 0)),   # img tile: resident over j
            pl.BlockSpec((block, D), lambda i, j: (j, 0)),   # txt tile
        ],
        out_specs=(
            pl.BlockSpec((block, block), lambda i, j: (i, j)),
            pl.BlockSpec((block, 1), lambda i, j: (i, 0)),
            pl.BlockSpec((nI, 1, block), lambda i, j: (0, 0, 0)),  # resident whole kernel
        ),
        scratch_shapes=[
            pltpu.VMEM((block, 1), jnp.float32),      # m_row
            pltpu.VMEM((block, 1), jnp.float32),      # l_row
            pltpu.VMEM((block, 1), jnp.float32),      # d_row (diag of current row tile)
            pltpu.VMEM((nI, 1, block), jnp.float32),  # m_col
            pltpu.VMEM((nI, 1, block), jnp.float32),  # l_col
            pltpu.VMEM((nI, 1, block), jnp.float32),  # d_col (diag per column tile)
        ],
        compiler_params=pltpu.CompilerParams(
            dimension_semantics=("arbitrary", "arbitrary"),
            vmem_limit_bytes=48 * 1024 * 1024,
        ),
    )(img, txt)

    return img_loss.reshape(N), txt_loss.reshape(N), logits


if __name__ == "__main__":
    # Deterministic init mirroring the module: logit_scale param = log(1/temp),
    # forward receives its exponential (== 1/temp).
    temperature = {"init_temp": 0.07, "learnable": True}
    logit_scale = float(np.exp(np.log(1.0 / temperature["init_temp"])))

    # Small CLIP-like shapes that still exercise the 2x2 tile grid.
    N, D = 256, 128
    key = jax.random.PRNGKey(0)
    k1, k2 = jax.random.split(key)
    img = jax.random.normal(k1, (N, D), dtype=jnp.float32)
    txt = jax.random.normal(k2, (N, D), dtype=jnp.float32)
    img = img / jnp.linalg.norm(img, axis=-1, keepdims=True)
    txt = txt / jnp.linalg.norm(txt, axis=-1, keepdims=True)

    fn = jax.jit(lambda a, b, s: clip_loss(a, b, s, block=128))
    image_loss, text_loss, logits = fn(img, txt, logit_scale)
    jax.block_until_ready((image_loss, text_loss, logits))

    # Pure-JAX f32 reference of the same semantics (tolerance loosened for the
    # bf16 MXU operands; accumulation stays f32).
    ref_logits = logit_scale * img @ txt.T
    ref_diag = jnp.diagonal(ref_logits)
    ref_img_loss = jax.nn.logsumexp(ref_logits, axis=-1) - ref_diag
    ref_txt_loss = jax.nn.logsumexp(ref_logits.T, axis=-1) - ref_diag

    assert jnp.allclose(logits, ref_logits, atol=1e-1, rtol=2e-2)
    assert jnp.allclose(image_loss, ref_img_loss, atol=1e-1, rtol=2e-2)
    assert jnp.allclose(text_loss, ref_txt_loss, atol=1e-1, rtol=2e-2)

    print("KERNEL_OK")
</pallas_src>

<mosaic_0001>
module attributes {stable_mosaic.version = 11 : i64} {
  func.func @clip_loss_kernel(%arg0: i32, %arg1: i32, %arg2: memref<128x128xbf16, #tpu.memory_space<vmem>>, %arg3: memref<128x128xbf16, #tpu.memory_space<vmem>>, %arg4: memref<128x128xf32, #tpu.memory_space<vmem>>, %arg5: memref<128x1xf32, #tpu.memory_space<vmem>>, %arg6: memref<2x1x128xf32, #tpu.memory_space<vmem>>, %arg7: memref<128x1xf32, #tpu.memory_space<vmem>>, %arg8: memref<128x1xf32, #tpu.memory_space<vmem>>, %arg9: memref<128x1xf32, #tpu.memory_space<vmem>>, %arg10: memref<2x1x128xf32, #tpu.memory_space<vmem>>, %arg11: memref<2x1x128xf32, #tpu.memory_space<vmem>>, %arg12: memref<2x1x128xf32, #tpu.memory_space<vmem>>) attributes {dimension_semantics = [#tpu.dimension_semantics<arbitrary>, #tpu.dimension_semantics<arbitrary>], iteration_bounds = array<i64: 2, 2>, scalar_prefetch = 0 : i64, scratch_operands = 6 : i64, tpu.core_type = #tpu.core_type<tc>, window_params = [{transform_indices = @transform_0, window_bounds = array<i64: 128, 128>}, {transform_indices = @transform_1, window_bounds = array<i64: 128, 128>}, {transform_indices = @transform_2, window_bounds = array<i64: 128, 128>}, {transform_indices = @transform_3, window_bounds = array<i64: 128, 1>}, {pipeline_mode = #tpu.pipeline_mode<synchronous>, transform_indices = @transform_4, window_bounds = array<i64: 2, 1, 128>}]} {
    %c0_i32 = arith.constant 0 : i32
    %0 = arith.cmpi eq, %arg1, %c0_i32 : i32
    %1 = arith.extui %0 : i1 to i32
    %c0_i32_0 = arith.constant 0 : i32
    %2 = arith.cmpi ne, %1, %c0_i32_0 : i32
    scf.if %2 {
      %cst_33 = arith.constant 0xFF800000 : f32
      %70 = vector.broadcast %cst_33 : f32 to vector<128x1xf32>
      %c0_34 = arith.constant 0 : index
      %c0_35 = arith.constant 0 : index
      %71 = vector.load %arg7[%c0_34, %c0_35] : memref<128x1xf32, #tpu.memory_space<vmem>>, vector<128x1xf32>
      tpu.vector_store %arg7[%c0_34, %c0_35], %70 {strides = array<i32>} : memref<128x1xf32, #tpu.memory_space<vmem>>, vector<128x1xf32>,
      %cst_36 = arith.constant 0.000000e+00 : f32
      %72 = vector.broadcast %cst_36 : f32 to vector<128x1xf32>
      %c0_37 = arith.constant 0 : index
      %c0_38 = arith.constant 0 : index
      %73 = vector.load %arg8[%c0_37, %c0_38] : memref<128x1xf32, #tpu.memory_space<vmem>>, vector<128x1xf32>
      tpu.vector_store %arg8[%c0_37, %c0_38], %72 {strides = array<i32>} : memref<128x1xf32, #tpu.memory_space<vmem>>, vector<128x1xf32>,
    } else {
    }
    %c0_i32_1 = arith.constant 0 : i32
    %3 = arith.cmpi eq, %arg0, %c0_i32_1 : i32
    %c0_i32_2 = arith.constant 0 : i32
    %4 = arith.cmpi eq, %arg1, %c0_i32_2 : i32
    %5 = arith.andi %3, %4 : i1
    %6 = arith.extui %5 : i1 to i32
    %c0_i32_3 = arith.constant 0 : i32
    %7 = arith.cmpi ne, %6, %c0_i32_3 : i32
    scf.if %7 {
      %cst_33 = arith.constant 0xFF800000 : f32
      %70 = vector.broadcast %cst_33 : f32 to vector<2x1x128xf32>
      %c0_34 = arith.constant 0 : index
      %c0_35 = arith.constant 0 : index
      %c0_36 = arith.constant 0 : index
      %71 = vector.load %arg10[%c0_34, %c0_35, %c0_36] : memref<2x1x128xf32, #tpu.memory_space<vmem>>, vector<2x1x128xf32>
      tpu.vector_store %arg10[%c0_34, %c0_35, %c0_36], %70 {strides = array<i32>} : memref<2x1x128xf32, #tpu.memory_space<vmem>>, vector<2x1x128xf32>,
      %cst_37 = arith.constant 0.000000e+00 : f32
      %72 = vector.broadcast %cst_37 : f32 to vector<2x1x128xf32>
      %c0_38 = arith.constant 0 : index
      %c0_39 = arith.constant 0 : index
      %c0_40 = arith.constant 0 : index
      %73 = vector.load %arg11[%c0_38, %c0_39, %c0_40] : memref<2x1x128xf32, #tpu.memory_space<vmem>>, vector<2x1x128xf32>
      tpu.vector_store %arg11[%c0_38, %c0_39, %c0_40], %72 {strides = array<i32>} : memref<2x1x128xf32, #tpu.memory_space<vmem>>, vector<2x1x128xf32>,
    } else {
    }
    %c0 = arith.constant 0 : index
    %c0_4 = arith.constant 0 : index
    %8 = vector.load %arg2[%c0, %c0_4] : memref<128x128xbf16, #tpu.memory_space<vmem>>, vector<128x128xbf16>
    %c0_5 = arith.constant 0 : index
    %c0_6 = arith.constant 0 : index
    %9 = vector.load %arg3[%c0_5, %c0_6] : memref<128x128xbf16, #tpu.memory_space<vmem>>, vector<128x128xbf16>
    %cst = arith.constant dense<0.000000e+00> : vector<128x128xf32>
    %10 = tpu.matmul %8, %9, %cst {dimension_numbers = #tpu.dot_dimension_numbers<[1], [1], [0], [0], [0, 0, 1, 0], [], []>} : vector<128x128xbf16>, vector<128x128xbf16>, vector<128x128xf32> -> vector<128x128xf32>
    %c0_7 = arith.constant 0 : index
    %c0_8 = arith.constant 0 : index
    %11 = vector.load %arg4[%c0_7, %c0_8] : memref<128x128xf32, #tpu.memory_space<vmem>>, vector<128x128xf32>
    tpu.vector_store %arg4[%c0_7, %c0_8], %10 {strides = array<i32>} : memref<128x128xf32, #tpu.memory_space<vmem>>, vector<128x128xf32>,
    %12 = arith.cmpi eq, %arg0, %arg1 : i32
    %13 = arith.extui %12 : i1 to i32
    %c0_i32_9 = arith.constant 0 : i32
    %14 = arith.cmpi ne, %13, %c0_i32_9 : i32
    scf.if %14 {
      %70 = tpu.iota {dimensions = array<i32: 0>} : vector<128x128xi32>
      %71 = tpu.iota {dimensions = array<i32: 1>} : vector<128x128xi32>
      %72 = arith.cmpi eq, %70, %71 : vector<128x128xi32>
      %cst_33 = arith.constant 0.000000e+00 : f32
      %73 = vector.broadcast %cst_33 : f32 to vector<128x128xf32>
      %74 = arith.select %72, %10, %73 : vector<128x128xi1>, vector<128x128xf32>
      %cst_34 = arith.constant dense<0.000000e+00> : vector<128xf32>
      %75 = vector.multi_reduction <add>, %74, %cst_34 [1] : vector<128x128xf32> to vector<128xf32>
      %76 = vector.shape_cast %75 : vector<128xf32> to vector<128x1xf32>
      %c0_35 = arith.constant 0 : index
      %c0_36 = arith.constant 0 : index
      %77 = vector.load %arg9[%c0_35, %c0_36] : memref<128x1xf32, #tpu.memory_space<vmem>>, vector<128x1xf32>
      tpu.vector_store %arg9[%c0_35, %c0_36], %76 {strides = array<i32>} : memref<128x1xf32, #tpu.memory_space<vmem>>, vector<128x1xf32>,
      %cst_37 = arith.constant dense<0.000000e+00> : vector<128xf32>
      %78 = vector.multi_reduction <add>, %74, %cst_37 [0] : vector<128x128xf32> to vector<128xf32>
      %79 = vector.shape_cast %78 : vector<128xf32> to vector<1x128xf32>
      %80 = arith.index_cast %arg0 : i32 to index
      %c0_38 = arith.constant 0 : index
      %c0_39 = arith.constant 0 : index
      %81 = vector.load %arg12[%80, %c0_38, %c0_39] : memref<2x1x128xf32, #tpu.memory_space<vmem>>, vector<1x1x128xf32>
      %82 = vector.shape_cast %81 : vector<1x1x128xf32> to vector<1x128xf32>
      %83 = vector.shape_cast %79 : vector<1x128xf32> to vector<1x1x128xf32>
      tpu.vector_store %arg12[%80, %c0_38, %c0_39], %83 {strides = array<i32>} : memref<2x1x128xf32, #tpu.memory_space<vmem>>, vector<1x1x128xf32>,
    } else {
    }
    %c0_10 = arith.constant 0 : index
    %c0_11 = arith.constant 0 : index
    %15 = vector.load %arg7[%c0_10, %c0_11] : memref<128x1xf32, #tpu.memory_space<vmem>>, vector<128x1xf32>
    %cst_12 = arith.constant dense<0xFF800000> : vector<128xf32>
    %16 = vector.multi_reduction <maximumf>, %10, %cst_12 [1] : vector<128x128xf32> to vector<128xf32>
    %17 = vector.shape_cast %16 : vector<128xf32> to vector<128x1xf32>
    %18 = arith.maximumf %15, %17 : vector<128x1xf32>
    %19 = vector.broadcast %18 : vector<128x1xf32> to vector<128x128xf32>
    %20 = arith.subf %10, %19 : vector<128x128xf32>
    %21 = math.exp %20 : vector<128x128xf32>
    %22 = arith.subf %15, %18 : vector<128x1xf32>
    %23 = math.exp %22 : vector<128x1xf32>
    %c0_13 = arith.constant 0 : index
    %c0_14 = arith.constant 0 : index
    %24 = vector.load %arg8[%c0_13, %c0_14] : memref<128x1xf32, #tpu.memory_space<vmem>>, vector<128x1xf32>
    %25 = arith.mulf %23, %24 : vector<128x1xf32>
    %cst_15 = arith.constant dense<0.000000e+00> : vector<128xf32>
    %26 = vector.multi_reduction <add>, %21, %cst_15 [1] : vector<128x128xf32> to vector<128xf32>
    %27 = vector.shape_cast %26 : vector<128xf32> to vector<128x1xf32>
    %28 = arith.addf %25, %27 : vector<128x1xf32>
    %c0_16 = arith.constant 0 : index
    %c0_17 = arith.constant 0 : index
    %29 = vector.load %arg8[%c0_16, %c0_17] : memref<128x1xf32, #tpu.memory_space<vmem>>, vector<128x1xf32>
    tpu.vector_store %arg8[%c0_16, %c0_17], %28 {strides = array<i32>} : memref<128x1xf32, #tpu.memory_space<vmem>>, vector<128x1xf32>,
    %c0_18 = arith.constant 0 : index
    %c0_19 = arith.constant 0 : index
    %30 = vector.load %arg7[%c0_18, %c0_19] : memref<128x1xf32, #tpu.memory_space<vmem>>, vector<128x1xf32>
    tpu.vector_store %arg7[%c0_18, %c0_19], %18 {strides = array<i32>} : memref<128x1xf32, #tpu.memory_space<vmem>>, vector<128x1xf32>,
    %cst_20 = arith.constant dense<0xFF800000> : vector<1xf32>
    %31 = vector.multi_reduction <maximumf>, %18, %cst_20 [0] : vector<128x1xf32> to vector<1xf32>
    %32 = vector.shape_cast %31 : vector<1xf32> to vector<1x1xf32>
    %33 = vector.broadcast %32 : vector<1x1xf32> to vector<128x1xf32>
    %34 = arith.subf %18, %33 : vector<128x1xf32>
    %35 = math.exp %34 : vector<128x1xf32>
    %36 = vector.broadcast %35 : vector<128x1xf32> to vector<128x128xf32>
    %37 = arith.mulf %21, %36 : vector<128x128xf32>
    %cst_21 = arith.constant dense<0.000000e+00> : vector<128xf32>
    %38 = vector.multi_reduction <add>, %37, %cst_21 [0] : vector<128x128xf32> to vector<128xf32>
    %39 = vector.shape_cast %38 : vector<128xf32> to vector<1x128xf32>
    %40 = arith.index_cast %arg1 : i32 to index
    %c0_22 = arith.constant 0 : index
    %c0_23 = arith.constant 0 : index
    %41 = vector.load %arg10[%40, %c0_22, %c0_23] : memref<2x1x128xf32, #tpu.memory_space<vmem>>, vector<1x1x128xf32>
    %42 = vector.shape_cast %41 : vector<1x1x128xf32> to vector<1x128xf32>
    %43 = vector.broadcast %32 : vector<1x1xf32> to vector<1x128xf32>
    %44 = arith.maximumf %42, %43 : vector<1x128xf32>
    %45 = arith.subf %42, %44 : vector<1x128xf32>
    %46 = math.exp %45 : vector<1x128xf32>
    %47 = arith.index_cast %arg1 : i32 to index
    %c0_24 = arith.constant 0 : index
    %c0_25 = arith.constant 0 : index
    %48 = vector.load %arg11[%47, %c0_24, %c0_25] : memref<2x1x128xf32, #tpu.memory_space<vmem>>, vector<1x1x128xf32>
    %49 = vector.shape_cast %48 : vector<1x1x128xf32> to vector<1x128xf32>
    %50 = arith.mulf %46, %49 : vector<1x128xf32>
    %51 = vector.broadcast %32 : vector<1x1xf32> to vector<1x128xf32>
    %52 = arith.subf %51, %44 : vector<1x128xf32>
    %53 = math.exp %52 : vector<1x128xf32>
    %54 = arith.mulf %39, %53 : vector<1x128xf32>
    %55 = arith.addf %50, %54 : vector<1x128xf32>
    %56 = arith.index_cast %arg1 : i32 to index
    %c0_26 = arith.constant 0 : index
    %c0_27 = arith.constant 0 : index
    %57 = vector.load %arg11[%56, %c0_26, %c0_27] : memref<2x1x128xf32, #tpu.memory_space<vmem>>, vector<1x1x128xf32>
    %58 = vector.shape_cast %57 : vector<1x1x128xf32> to vector<1x128xf32>
    %59 = vector.shape_cast %55 : vector<1x128xf32> to vector<1x1x128xf32>
    tpu.vector_store %arg11[%56, %c0_26, %c0_27], %59 {strides = array<i32>} : memref<2x1x128xf32, #tpu.memory_space<vmem>>, vector<1x1x128xf32>,
    %60 = arith.index_cast %arg1 : i32 to index
    %c0_28 = arith.constant 0 : index
    %c0_29 = arith.constant 0 : index
    %61 = vector.load %arg10[%60, %c0_28, %c0_29] : memref<2x1x128xf32, #tpu.memory_space<vmem>>, vector<1x1x128xf32>
    %62 = vector.shape_cast %61 : vector<1x1x128xf32> to vector<1x128xf32>
    %63 = vector.shape_cast %44 : vector<1x128xf32> to vector<1x1x128xf32>
    tpu.vector_store %arg10[%60, %c0_28, %c0_29], %63 {strides = array<i32>} : memref<2x1x128xf32, #tpu.memory_space<vmem>>, vector<1x1x128xf32>,
    %c1_i32 = arith.constant 1 : i32
    %64 = arith.cmpi eq, %arg1, %c1_i32 : i32
    %65 = arith.extui %64 : i1 to i32
    %c0_i32_30 = arith.constant 0 : i32
    %66 = arith.cmpi ne, %65, %c0_i32_30 : i32
    scf.if %66 {
      %c0_33 = arith.constant 0 : index
      %c0_34 = arith.constant 0 : index
      %70 = vector.load %arg7[%c0_33, %c0_34] : memref<128x1xf32, #tpu.memory_space<vmem>>, vector<128x1xf32>
      %c0_35 = arith.constant 0 : index
      %c0_36 = arith.constant 0 : index
      %71 = vector.load %arg8[%c0_35, %c0_36] : memref<128x1xf32, #tpu.memory_space<vmem>>, vector<128x1xf32>
      %72 = math.log %71 : vector<128x1xf32>
      %73 = arith.addf %70, %72 : vector<128x1xf32>
      %c0_37 = arith.constant 0 : index
      %c0_38 = arith.constant 0 : index
      %74 = vector.load %arg9[%c0_37, %c0_38] : memref<128x1xf32, #tpu.memory_space<vmem>>, vector<128x1xf32>
      %75 = arith.subf %73, %74 : vector<128x1xf32>
      %c0_39 = arith.constant 0 : index
      %c0_40 = arith.constant 0 : index
      %76 = vector.load %arg5[%c0_39, %c0_40] : memref<128x1xf32, #tpu.memory_space<vmem>>, vector<128x1xf32>
      tpu.vector_store %arg5[%c0_39, %c0_40], %75 {strides = array<i32>} : memref<128x1xf32, #tpu.memory_space<vmem>>, vector<128x1xf32>,
    } else {
    }
    %c1_i32_31 = arith.constant 1 : i32
    %67 = arith.cmpi eq, %arg0, %c1_i32_31 : i32
    %68 = arith.extui %67 : i1 to i32
    %c0_i32_32 = arith.constant 0 : i32
    %69 = arith.cmpi ne, %68, %c0_i32_32 : i32
    scf.if %69 {
      %70 = arith.index_cast %arg1 : i32 to index
      %c0_33 = arith.constant 0 : index
      %c0_34 = arith.constant 0 : index
      %71 = vector.load %arg10[%70, %c0_33, %c0_34] : memref<2x1x128xf32, #tpu.memory_space<vmem>>, vector<1x1x128xf32>
      %72 = vector.shape_cast %71 : vector<1x1x128xf32> to vector<1x128xf32>
      %73 = arith.index_cast %arg1 : i32 to index
      %c0_35 = arith.constant 0 : index
      %c0_36 = arith.constant 0 : index
      %74 = vector.load %arg11[%73, %c0_35, %c0_36] : memref<2x1x128xf32, #tpu.memory_space<vmem>>, vector<1x1x128xf32>
      %75 = vector.shape_cast %74 : vector<1x1x128xf32> to vector<1x128xf32>
      %76 = math.log %75 : vector<1x128xf32>
      %77 = arith.addf %72, %76 : vector<1x128xf32>
      %78 = arith.index_cast %arg1 : i32 to index
      %c0_37 = arith.constant 0 : index
      %c0_38 = arith.constant 0 : index
      %79 = vector.load %arg12[%78, %c0_37, %c0_38] : memref<2x1x128xf32, #tpu.memory_space<vmem>>, vector<1x1x128xf32>
      %80 = vector.shape_cast %79 : vector<1x1x128xf32> to vector<1x128xf32>
      %81 = arith.subf %77, %80 : vector<1x128xf32>
      %82 = arith.index_cast %arg1 : i32 to index
      %c0_39 = arith.constant 0 : index
      %c0_40 = arith.constant 0 : index
      %83 = vector.load %arg6[%82, %c0_39, %c0_40] : memref<2x1x128xf32, #tpu.memory_space<vmem>>, vector<1x1x128xf32>
      %84 = vector.shape_cast %83 : vector<1x1x128xf32> to vector<1x128xf32>
      %85 = vector.shape_cast %81 : vector<1x128xf32> to vector<1x1x128xf32>
      tpu.vector_store %arg6[%82, %c0_39, %c0_40], %85 {strides = array<i32>} : memref<2x1x128xf32, #tpu.memory_space<vmem>>, vector<1x1x128xf32>,
    } else {
    }
    return
  }
  func.func @transform_0(%arg0: i32, %arg1: i32) -> (i32, i32) {
    %c0_i32 = arith.constant 0 : i32
    %c0_i32_0 = arith.constant 0 : i32
    return %arg0, %c0_i32 : i32, i32
  }
  func.func @transform_1(%arg0: i32, %arg1: i32) -> (i32, i32) {
    %c0_i32 = arith.constant 0 : i32
    %c0_i32_0 = arith.constant 0 : i32
    return %arg1, %c0_i32 : i32, i32
  }
  func.func @transform_2(%arg0: i32, %arg1: i32) -> (i32, i32) {
    %c0_i32 = arith.constant 0 : i32
    return %arg0, %arg1 : i32, i32
  }
  func.func @transform_3(%arg0: i32, %arg1: i32) -> (i32, i32) {
    %c0_i32 = arith.constant 0 : i32
    %c0_i32_0 = arith.constant 0 : i32
    return %arg0, %c0_i32 : i32, i32
  }
  func.func @transform_4(%arg0: i32, %arg1: i32) -> (i32, i32, i32) {
    %c0_i32 = arith.constant 0 : i32
    %c0_i32_0 = arith.constant 0 : i32
    %c0_i32_1 = arith.constant 0 : i32
    %c0_i32_2 = arith.constant 0 : i32
    return %c0_i32, %c0_i32_0, %c0_i32_1 : i32, i32, i32
  }
}

</mosaic_0001>

<llo_original>
// kernel: _lambda_.1
$region0: #{_lambda_.1}
  #allocation0 [shape = 'u32[]', space=smem, size = 0x4, offset = 0x4, fixed_abs, tag = 'smem constant byte address 0x4 - core index']
  #allocation1 [shape = 'u32[144,128]{1,0:T(1,128)}', space=vmem, size = 0x12000, scoped, tag = 'internal scratch']
  #allocation2 [shape = 'f32[128,1]{1,0:T(8,128)}', space=vmem, size = 0x10000, scoped, tag = 'scratch operand']
  #allocation3 [shape = 'f32[128,1]{1,0:T(8,128)}', space=vmem, size = 0x10000, scoped, tag = 'scratch operand']
  #allocation4 [shape = 'f32[128,1]{1,0:T(8,128)}', space=vmem, size = 0x10000, scoped, tag = 'scratch operand']
  #allocation5 [shape = 'f32[2,1,128]{2,1,0:T(1,128)}', space=vmem, size = 0x400, scoped, tag = 'scratch operand']
  #allocation6 [shape = 'f32[2,1,128]{2,1,0:T(1,128)}', space=vmem, size = 0x400, scoped, tag = 'scratch operand']
  #allocation7 [shape = 'f32[2,1,128]{2,1,0:T(1,128)}', space=vmem, size = 0x400, scoped, tag = 'scratch operand']
  %s0 = inlined_call_operand.vmem [shape: bf16[256,128], index: 0, kind: input, shape index: {}]
  %s1 = inlined_call_operand.vmem [shape: bf16[256,128], index: 1, kind: input, shape index: {}]
  %s2 = inlined_call_operand.hbm [shape: f32[256,256], index: 2, kind: output, shape index: {0}]
  %s3 = inlined_call_operand.vmem [shape: f32[256,1], index: 3, kind: output, shape index: {1}]
  %s4 = inlined_call_operand.hbm [shape: f32[2,1,128], index: 4, kind: output, shape index: {2}]
  %5 = xla_tuple %s2, %s3, %s4
  %s6 = sld [smem:[#allocation0]]
  $region77: #{_lambda_.1} parent=0
    _
  %s8 = ssub.s32 1, %s6
  %s9 = scalar_select 0, %s8, %s6
  $region1: #{_lambda_.1} parent=0
    #allocation8 [shape = 'u8[131072]{0}', space=vmem, size = 0x20000, scoped, tag = 'output window, operand 0']
    #allocation9 [shape = 's32[2]{0}', space=sflag, size = 0x8, scoped, tag = 'scoped memory for _lambda_.1']
    #allocation10 [shape = 'u8[1024]{0}', space=vmem, size = 0x400, scoped, tag = 'output window, operand 2, single buffered']
    #allocation11 [shape = 's32[1]{0}', space=sflag, size = 0x4, scoped, tag = 'scoped memory for _lambda_.1']
    %10 = vsyncpa [#allocation9], 0
    %s11 = scalar_lea.sflag [#allocation9], 1
    %12 = vsyncpa %s11, 0
    %13 = vsyncpa [#allocation11], 0
    loop: start=0, step=1, limit=6
    $region2: #{_lambda_.1} parent=1 // loop_pre_header
      _
    $region3: #{_lambda_.1} parent=1 // loop_header
      %s15 = sphi 0, %s19
      %p16 = scmp.ge.s32.totalorder %s15, 6
      %s22 = sphi 0, %s34
      %s23 = sphi 0, %s30
      %s24 = sphi 0, %s22
      %s25 = sphi 0, %s23
      %s26 = sphi 0, %s24
      %s27 = sphi 0, %s25
      %s37 = sphi 0, %s39
      %s40 = sphi 0, %s37
      %s41 = sphi 0, %s40
      %s57 = sphi 0, %s41
      %s63 = sphi 0, %s65
      %s66 = sphi 0, %s63
      %s67 = sphi 0, %s66
      %s83 = sphi 0, %s67
      %s91 = sphi 0, %s93
      %s94 = sphi 0, %s91
      %s95 = sphi 0, %s94
      %s111 = sphi 0, %s95
      %s117 = sphi 0, %s119
      %s120 = sphi 0, %s117
      %s121 = sphi 0, %s120
      %s137 = sphi 0, %s121
      %s141 = sphi 0, %s141
      %s143 = sphi 0, %s141
      %s144 = sphi 0, %s143
      %s158 = sphi 0, %s144
    $region4: #{_lambda_.1} parent=1 // loop_header_branch
      %18 = sbr.rel (%p16) target = $region8
    $region5: #{_lambda_.1} parent=1 // loop_body
      %s20 = ssub.s32 %s15, 1
      %s21 = ssub.s32 %s15, 2
      %s28 = sadd.s32 1, %s23
      %p29 = scmp.ge.s32.totalorder %s28, 2
      %s30 = scalar_select %p29, 0, %s28
      %s31 = sadd.s32 1, %s22
      %s32 = scalar_select %p29, %s31, %s22
      %p33 = scmp.ge.s32.totalorder %s32, 2
      %s34 = scalar_select %p33, 0, %s32
      %s35 = ssub.s32 %s22, %s34
      %p36 = scmp.eq.s32.totalorder %s35, 0
      %s38 = sadd.s32 %s37, 1
      %s39 = scalar_select %p36, %s37, %s38
      %p42 = pneg %p36
      %p43 = scmp.eq.s32.totalorder %s15, 3
      %p44 = por %p42, %p43
      %p45 = scmp.ne.s32.totalorder %s37, %s40
      %p46 = scmp.eq.s32.totalorder %s15, 0
      %p47 = por %p45, %p46
      %p48 = scmp.ne.s32.totalorder %s37, %s40
      %p49 = scmp.eq.s32.totalorder %s20, 3
      %p50 = por %p48, %p49
      %p51 = scmp.ne.s32.totalorder %s40, %s41
      %p52 = scmp.eq.s32.totalorder %s20, 0
      %p53 = por %p51, %p52
      %p54 = scmp.ne.s32.totalorder %s40, %s41
      %p55 = scmp.eq.s32.totalorder %s21, 3
      %p56 = por %p54, %p55
      %p58 = scmp.ne.s32.totalorder %s41, %s57
      %p59 = scmp.eq.s32.totalorder %s21, 0
      %p60 = por %p58, %p59
      %s61 = ssub.s32 %s23, %s30
      %p62 = scmp.eq.s32.totalorder %s61, 0
      %s64 = sadd.s32 %s63, 1
      %s65 = scalar_select %p62, %s63, %s64
      %p68 = pneg %p62
      %p69 = scmp.eq.s32.totalorder %s15, 3
      %p70 = por %p68, %p69
      %p71 = scmp.ne.s32.totalorder %s63, %s66
      %p72 = scmp.eq.s32.totalorder %s15, 0
      %p73 = por %p71, %p72
      %p74 = scmp.ne.s32.totalorder %s63, %s66
      %p75 = scmp.eq.s32.totalorder %s20, 3
      %p76 = por %p74, %p75
      %p77 = scmp.ne.s32.totalorder %s66, %s67
      %p78 = scmp.eq.s32.totalorder %s20, 0
      %p79 = por %p77, %p78
      %p80 = scmp.ne.s32.totalorder %s66, %s67
      %p81 = scmp.eq.s32.totalorder %s21, 3
      %p82 = por %p80, %p81
      %p84 = scmp.ne.s32.totalorder %s67, %s83
      %p85 = scmp.eq.s32.totalorder %s21, 0
      %p86 = por %p84, %p85
      %s87 = ssub.s32 %s22, %s34
      %s88 = ssub.s32 %s23, %s30
      %s89 = sor.u32 %s87, %s88
      %p90 = scmp.eq.s32.totalorder %s89, 0
      %s92 = sadd.s32 %s91, 1
      %s93 = scalar_select %p90, %s91, %s92
      %p96 = pneg %p90
      %p97 = scmp.eq.s32.totalorder %s15, 3
      %p98 = por %p96, %p97
      %p99 = scmp.ne.s32.totalorder %s91, %s94
      %p100 = scmp.eq.s32.totalorder %s15, 0
      %p101 = por %p99, %p100
      %p102 = scmp.ne.s32.totalorder %s91, %s94
      %p103 = scmp.eq.s32.totalorder %s20, 3
      %p104 = por %p102, %p103
      %p105 = scmp.ne.s32.totalorder %s94, %s95
      %p106 = scmp.eq.s32.totalorder %s20, 0
      %p107 = por %p105, %p106
      %p108 = scmp.ne.s32.totalorder %s94, %s95
      %p109 = scmp.eq.s32.totalorder %s21, 3
      %p110 = por %p108, %p109
      %p112 = scmp.ne.s32.totalorder %s95, %s111
      %p113 = scmp.eq.s32.totalorder %s21, 0
      %p114 = por %p112, %p113
      %s115 = ssub.s32 %s22, %s34
      %p116 = scmp.eq.s32.totalorder %s115, 0
      %s118 = sadd.s32 %s117, 1
      %s119 = scalar_select %p116, %s117, %s118
      %p122 = pneg %p116
      %p123 = scmp.eq.s32.totalorder %s15, 3
      %p124 = por %p122, %p123
      %p125 = scmp.ne.s32.totalorder %s117, %s120
      %p126 = scmp.eq.s32.totalorder %s15, 0
      %p127 = por %p125, %p126
      %p128 = scmp.ne.s32.totalorder %s117, %s120
      %p129 = scmp.eq.s32.totalorder %s20, 3
      %p130 = por %p128, %p129
      %p131 = scmp.ne.s32.totalorder %s120, %s121
      %p132 = scmp.eq.s32.totalorder %s20, 0
      %p133 = por %p131, %p132
      %p134 = scmp.ne.s32.totalorder %s120, %s121
      %p135 = scmp.eq.s32.totalorder %s21, 3
      %p136 = por %p134, %p135
      %p138 = scmp.ne.s32.totalorder %s121, %s137
      %p139 = scmp.eq.s32.totalorder %s21, 0
      %p140 = por %p138, %p139
      %s142 = sadd.s32 %s141, 1
      %p145 = scmp.eq.s32.totalorder %s15, 3
      %p146 = scmp.ne.s32.totalorder %s141, %s143
      %p147 = scmp.eq.s32.totalorder %s15, 0
      %p148 = por %p146, %p147
      %p149 = scmp.ne.s32.totalorder %s141, %s143
      %p150 = scmp.eq.s32.totalorder %s20, 3
      %p151 = por %p149, %p150
      %p152 = scmp.ne.s32.totalorder %s143, %s144
      %p153 = scmp.eq.s32.totalorder %s20, 0
      %p154 = por %p152, %p153
      %p155 = scmp.ne.s32.totalorder %s143, %s144
      %p156 = scmp.eq.s32.totalorder %s21, 3
      %p157 = por %p155, %p156
      %p159 = scmp.ne.s32.totalorder %s144, %s158
      %p160 = scmp.eq.s32.totalorder %s21, 0
      %p161 = por %p159, %p160
      %p162 = scmp.le.s32.totalorder 1, %s15
      %p163 = scmp.lt.s32.totalorder %s15, 5
      %p164 = pnand %p162, %p163
      %p165 = pneg %p164
      // Predicated region
      $region9: #{_lambda_.1} parent=5 // pred_check
        _
      $region10: #{_lambda_.1} parent=5 // pred_check_branch
        %167 = sbr.rel (%p164) target = $region12
      $region11: #{_lambda_.1} parent=5 // pred_region
        %s168 = ssub.s32 %s15, 1
      $region12: #{_lambda_.1} parent=5 // pred_fallthru
        _
      %p169 = scmp.lt.s32.totalorder %s15, 4
      // Predicated region
      $region13: #{_lambda_.1} parent=5 // pred_check
        %p170 = pneg %p169
      $region14: #{_lambda_.1} parent=5 // pred_check_branch
        %172 = sbr.rel (%p170) target = $region16
      $region15: #{_lambda_.1} parent=5 // pred_region
        // Predicated region
        $region17: #{_lambda_.1} parent=15 // pred_check
          %p173 = pneg %p47
        $region18: #{_lambda_.1} parent=15 // pred_check_branch
          %175 = sbr.rel (%p173) target = $region20
        $region19: #{_lambda_.1} parent=15 // pred_region
          %s176 = smul.u32 16, %s22
          %p177 = scmp.lt.s32.totalorder %s176, 31
          %s178 = scalar_select %p177, %s176, 31
          %s179 = smul.addr %s178, 4
          %s180 = scalar_lea.vmem %s0, %s179
          %s181 = smul.u32 16, %s22
        $region20: #{_lambda_.1} parent=15 // pred_fallthru
          _
        // Predicated region
        $region21: #{_lambda_.1} parent=15 // pred_check
          %p182 = pneg %p73
        $region22: #{_lambda_.1} parent=15 // pred_check_branch
          %184 = sbr.rel (%p182) target = $region24
        $region23: #{_lambda_.1} parent=15 // pred_region
          %s185 = smul.u32 16, %s23
          %p186 = scmp.lt.s32.totalorder %s185, 31
          %s187 = scalar_select %p186, %s185, 31
          %s188 = smul.addr %s187, 4
          %s189 = scalar_lea.vmem %s1, %s188
          %s190 = smul.u32 16, %s23
        $region24: #{_lambda_.1} parent=15 // pred_fallthru
          _
      $region16: #{_lambda_.1} parent=5 // pred_fallthru
        _
      %p191 = scmp.le.s32.totalorder 1, %s15
      %p192 = scmp.lt.s32.totalorder %s15, 5
      %p193 = pnand %p191, %p192
      %p194 = pneg %p193
      // Predicated region
      $region25: #{_lambda_.1} parent=5 // pred_check
        _
      $region26: #{_lambda_.1} parent=5 // pred_check_branch
        %196 = sbr.rel (%p193) target = $region28
      $region27: #{_lambda_.1} parent=5 // pred_region
        %s197 = ssub.s32 %s15, 1
        %s198 = smul.u32 16, %s24
        %p199 = scmp.lt.s32.totalorder %s198, 31
        %s200 = scalar_select %p199, %s198, 31
        %s201 = smul.addr %s200, 4
        %s202 = scalar_lea.vmem %s0, %s201
        %p203 = pneg %p53
        %p204 = pneg %p50
        %s205 = smul.u32 16, %s25
        %p206 = scmp.lt.s32.totalorder %s205, 31
        %s207 = scalar_select %p206, %s205, 31
        %s208 = smul.addr %s207, 4
        %s209 = scalar_lea.vmem %s1, %s208
        %p210 = pneg %p79
        %p211 = pneg %p76
        %p212 = pneg %p107
        %p213 = pneg %p104
        %s214 = sand.u32 %s94, 1
        %s215 = scalar_lea.sflag [#allocation9], %s214
        %s216 = sand.u32 %s94, 1
        %s217 = smul.addr %s216, 128
        %s218 = scalar_lea.vmem [#allocation8], %s217
        %p219 = pneg %p133
        %p220 = pneg %p130
        %s221 = smul.u32 16, %s24
        %p222 = scmp.lt.s32.totalorder %s221, 31
        %s223 = scalar_select %p222, %s221, 31
        %s224 = smul.addr %s223, 8
        %s225 = scalar_lea.vmem %s3, %s224
        %p226 = pneg %p154
        %p227 = pneg %p151
        %s228 = smul.u32 16, %s24
        %p229 = scmp.lt.s32.totalorder %s228, 31
        %s230 = scalar_select %p229, %s228, 31
        %s231 = smul.addr %s230, 4
        %s232 = scalar_lea.vmem %s0, %s231
        %s233 = smul.u32 16, %s24
        %s234 = smul.u32 16, %s25
        %p235 = scmp.lt.s32.totalorder %s234, 31
        %s236 = scalar_select %p235, %s234, 31
        %s237 = smul.addr %s236, 4
        %s238 = scalar_lea.vmem %s1, %s237
        %s239 = smul.u32 16, %s25
        %s240 = smul.u32 16, %s24
        %s241 = smul.u32 16, %s24
        %p242 = scmp.lt.s32.totalorder %s241, 31
        %s243 = scalar_select %p242, %s241, 31
        %s244 = smul.addr %s243, 8
        %s245 = scalar_lea.vmem %s3, %s244
        %s246 = smul.u32 16, %s24
        %p248 = scmp.eq.s32.totalorder %s25, 0
        // Predicated region
        $region29: #{_lambda_.1} parent=27 // pred_check
          %p249 = pneg %p248
        $region30: #{_lambda_.1} parent=27 // pred_check_branch
          %251 = sbr.rel (%p249) target = $region32
        $region31: #{_lambda_.1} parent=27 // pred_region
          %vm252 = vcmask 7168
          %253 = vst.msk [vmem:[#allocation2] sm:$0xff] %vm252, -inf
          %254 = vst.msk [vmem:[#allocation2 + $0x8] sm:$0xff] %vm252, -inf
          %255 = vst.msk [vmem:[#allocation2 + $0x10] sm:$0xff] %vm252, -inf
          %256 = vst.msk [vmem:[#allocation2 + $0x18] sm:$0xff] %vm252, -inf
          %257 = vst.msk [vmem:[#allocation2 + $0x20] sm:$0xff] %vm252, -inf
          %258 = vst.msk [vmem:[#allocation2 + $0x28] sm:$0xff] %vm252, -inf
          %259 = vst.msk [vmem:[#allocation2 + $0x30] sm:$0xff] %vm252, -inf
          %260 = vst.msk [vmem:[#allocation2 + $0x38] sm:$0xff] %vm252, -inf
          %261 = vst.msk [vmem:[#allocation2 + $0x40] sm:$0xff] %vm252, -inf
          %262 = vst.msk [vmem:[#allocation2 + $0x48] sm:$0xff] %vm252, -inf
          %263 = vst.msk [vmem:[#allocation2 + $0x50] sm:$0xff] %vm252, -inf
          %264 = vst.msk [vmem:[#allocation2 + $0x58] sm:$0xff] %vm252, -inf
          %265 = vst.msk [vmem:[#allocation2 + $0x60] sm:$0xff] %vm252, -inf
          %266 = vst.msk [vmem:[#allocation2 + $0x68] sm:$0xff] %vm252, -inf
          %267 = vst.msk [vmem:[#allocation2 + $0x70] sm:$0xff] %vm252, -inf
          %268 = vst.msk [vmem:[#allocation2 + $0x78] sm:$0xff] %vm252, -inf
          %269 = vst.msk [vmem:[#allocation3] sm:$0xff] %vm252, 0.0
          %270 = vst.msk [vmem:[#allocation3 + $0x8] sm:$0xff] %vm252, 0.0
          %271 = vst.msk [vmem:[#allocation3 + $0x10] sm:$0xff] %vm252, 0.0
          %272 = vst.msk [vmem:[#allocation3 + $0x18] sm:$0xff] %vm252, 0.0
          %273 = vst.msk [vmem:[#allocation3 + $0x20] sm:$0xff] %vm252, 0.0
          %274 = vst.msk [vmem:[#allocation3 + $0x28] sm:$0xff] %vm252, 0.0
          %275 = vst.msk [vmem:[#allocation3 + $0x30] sm:$0xff] %vm252, 0.0
          %276 = vst.msk [vmem:[#allocation3 + $0x38] sm:$0xff] %vm252, 0.0
          %277 = vst.msk [vmem:[#allocation3 + $0x40] sm:$0xff] %vm252, 0.0
          %278 = vst.msk [vmem:[#allocation3 + $0x48] sm:$0xff] %vm252, 0.0
          %279 = vst.msk [vmem:[#allocation3 + $0x50] sm:$0xff] %vm252, 0.0
          %280 = vst.msk [vmem:[#allocation3 + $0x58] sm:$0xff] %vm252, 0.0
          %281 = vst.msk [vmem:[#allocation3 + $0x60] sm:$0xff] %vm252, 0.0
          %282 = vst.msk [vmem:[#allocation3 + $0x68] sm:$0xff] %vm252, 0.0
          %283 = vst.msk [vmem:[#allocation3 + $0x70] sm:$0xff] %vm252, 0.0
          %284 = vst.msk [vmem:[#allocation3 + $0x78] sm:$0xff] %vm252, 0.0
        $region32: #{_lambda_.1} parent=27 // pred_fallthru
          _
        %p285 = scmp.eq.s32.totalorder %s24, 0
        %p286 = pnand %p285, %p248
        %p287 = pneg %p286
        // Predicated region
        $region33: #{_lambda_.1} parent=27 // pred_check
          _
        $region34: #{_lambda_.1} parent=27 // pred_check_branch
          %289 = sbr.rel (%p286) target = $region36
        $region35: #{_lambda_.1} parent=27 // pred_region
          %290 = vst [vmem:[#allocation5] sm:$0x1] -inf
          %291 = vst [vmem:[#allocation5 + $0x1] sm:$0x1] -inf
          %292 = vst [vmem:[#allocation6] sm:$0x1] 0.0
          %293 = vst [vmem:[#allocation6 + $0x1] sm:$0x1] 0.0
        $region36: #{_lambda_.1} parent=27 // pred_fallthru
          _
        %v294 = vld [vmem:[%s232] sm:$0xf]
        %v295 = vld [vmem:[%s232 + $0x4] sm:$0xf]
        %v296 = vld [vmem:[%s232 + $0x8] sm:$0xf]
        %v297 = vld [vmem:[%s232 + $0xc] sm:$0xf]
        %v298 = vld [vmem:[%s232 + $0x10] sm:$0xf]
        %v299 = vld [vmem:[%s232 + $0x14] sm:$0xf]
        %v300 = vld [vmem:[%s232 + $0x18] sm:$0xf]
        %v301 = vld [vmem:[%s232 + $0x1c] sm:$0xf]
        %v302 = vld [vmem:[%s232 + $0x20] sm:$0xf]
        %v303 = vld [vmem:[%s232 + $0x24] sm:$0xf]
        %v304 = vld [vmem:[%s232 + $0x28] sm:$0xf]
        %v305 = vld [vmem:[%s232 + $0x2c] sm:$0xf]
        %v306 = vld [vmem:[%s232 + $0x30] sm:$0xf]
        %v307 = vld [vmem:[%s232 + $0x34] sm:$0xf]
        %v308 = vld [vmem:[%s232 + $0x38] sm:$0xf]
        %v309 = vld [vmem:[%s232 + $0x3c] sm:$0xf]
        %v310 = vld [vmem:[%s238] sm:$0xf]
        %v311 = vld [vmem:[%s238 + $0x4] sm:$0xf]
        %v312 = vld [vmem:[%s238 + $0x8] sm:$0xf]
        %v313 = vld [vmem:[%s238 + $0xc] sm:$0xf]
        %v314 = vld [vmem:[%s238 + $0x10] sm:$0xf]
        %v315 = vld [vmem:[%s238 + $0x14] sm:$0xf]
        %v316 = vld [vmem:[%s238 + $0x18] sm:$0xf]
        %v317 = vld [vmem:[%s238 + $0x1c] sm:$0xf]
        %v318 = vld [vmem:[%s238 + $0x20] sm:$0xf]
        %v319 = vld [vmem:[%s238 + $0x24] sm:$0xf]
        %v320 = vld [vmem:[%s238 + $0x28] sm:$0xf]
        %v321 = vld [vmem:[%s238 + $0x2c] sm:$0xf]
        %v322 = vld [vmem:[%s238 + $0x30] sm:$0xf]
        %v323 = vld [vmem:[%s238 + $0x34] sm:$0xf]
        %v324 = vld [vmem:[%s238 + $0x38] sm:$0xf]
        %v325 = vld [vmem:[%s238 + $0x3c] sm:$0xf]
        %v342 = vunpack.c.l.b16 %v294
        %v343 = vunpack.c.l.b16 %v295
        %v344 = vunpack.c.l.b16 %v296
        %v345 = vunpack.c.l.b16 %v297
        %v346 = vunpack.c.l.b16 %v298
        %v347 = vunpack.c.l.b16 %v299
        %v348 = vunpack.c.l.b16 %v300
        %v349 = vunpack.c.l.b16 %v301
        %v350 = vunpack.c.l.b16 %v302
        %v351 = vunpack.c.l.b16 %v303
        %v352 = vunpack.c.l.b16 %v304
        %v353 = vunpack.c.l.b16 %v305
        %v354 = vunpack.c.l.b16 %v306
        %v355 = vunpack.c.l.b16 %v307
        %v356 = vunpack.c.l.b16 %v308
        %v357 = vunpack.c.l.b16 %v309
        %v358 = vpack.c.b16 %v343, %v342
        %v359 = vpack.c.b16 %v345, %v344
        %v360 = vpack.c.b16 %v347, %v346
        %v361 = vpack.c.b16 %v349, %v348
        %v362 = vpack.c.b16 %v351, %v350
        %v363 = vpack.c.b16 %v353, %v352
        %v364 = vpack.c.b16 %v355, %v354
        %v365 = vpack.c.b16 %v357, %v356
        %v390 = vunpack.c.l.b16 %v310
        %v391 = vunpack.c.l.b16 %v311
        %v392 = vunpack.c.l.b16 %v312
        %v393 = vunpack.c.l.b16 %v313
        %v394 = vunpack.c.l.b16 %v314
        %v395 = vunpack.c.l.b16 %v315
        %v396 = vunpack.c.l.b16 %v316
        %v397 = vunpack.c.l.b16 %v317
        %v398 = vunpack.c.l.b16 %v318
        %v399 = vunpack.c.l.b16 %v319
        %v400 = vunpack.c.l.b16 %v320
        %v401 = vunpack.c.l.b16 %v321
        %v402 = vunpack.c.l.b16 %v322
        %v403 = vunpack.c.l.b16 %v323
        %v404 = vunpack.c.l.b16 %v324
        %v405 = vunpack.c.l.b16 %v325
        %v406 = vpack.c.b16 %v391, %v390
        %v407 = vpack.c.b16 %v393, %v392
        %v408 = vpack.c.b16 %v395, %v394
        %v409 = vpack.c.b16 %v397, %v396
        %v410 = vpack.c.b16 %v399, %v398
        %v411 = vpack.c.b16 %v401, %v400
        %v412 = vpack.c.b16 %v403, %v402
        %v413 = vpack.c.b16 %v405, %v404
        %422 = vmatprep.subr.bf16.mxu0 0
        %423 = vmatpush1.bf16.xpose.msra.mxu0 %v406
        %424 = vmatprep.subr.bf16.mxu0 0
        %425 = vmatpush1.bf16.xpose.msra.mxu0 %v407
        %426 = vmatprep.subr.bf16.mxu0 0
        %427 = vmatpush1.bf16.xpose.msra.mxu0 %v408
        %428 = vmatprep.subr.bf16.mxu0 0
        %429 = vmatpush1.bf16.xpose.msra.mxu0 %v409
        %430 = vmatprep.subr.bf16.mxu0 0
        %431 = vmatpush1.bf16.xpose.msra.mxu0 %v410
        %432 = vmatprep.subr.bf16.mxu0 0
        %433 = vmatpush1.bf16.xpose.msra.mxu0 %v411
        %434 = vmatprep.subr.bf16.mxu0 0
        %435 = vmatpush1.bf16.xpose.msra.mxu0 %v412
        %436 = vmatprep.subr.bf16.mxu0 0
        %437 = vmatpush1.bf16.xpose.msra.mxu0 %v413
        %438 = vmatprep.subr.bf16.mxu0 0
        %439 = vmatpush1.bf16.xpose.msra.mxu0 0
        %440 = vmatprep.subr.bf16.mxu0 0
        %441 = vmatpush1.bf16.xpose.msra.mxu0 0
        %442 = vmatprep.subr.bf16.mxu0 0
        %443 = vmatpush1.bf16.xpose.msra.mxu0 0
        %444 = vmatprep.subr.bf16.mxu0 0
        %445 = vmatpush1.bf16.xpose.msra.mxu0 0
        %446 = vmatprep.subr.bf16.mxu0 0
        %447 = vmatpush1.bf16.xpose.msra.mxu0 0
        %448 = vmatprep.subr.bf16.mxu0 0
        %449 = vmatpush1.bf16.xpose.msra.mxu0 0
        %450 = vmatprep.subr.bf16.mxu0 0
        %451 = vmatpush1.bf16.xpose.msra.mxu0 0
        %452 = vmatprep.subr.bf16.mxu0 0
        %453 = vmatpush1.bf16.xpose.msra.mxu0 0
        %454 = vmatprep.mubr.bf16.mxu0 0
        %455 = vmatmul.mubr.bf16.gmra.mrb[0].mxu0 %v358
        %v456 = vpop.f32.mrb[0].mxu0
        %v457 = vadd.f32 0.0, %v456
        %v458 = vpop.f32.mrb[0].mxu0
        %v459 = vpop.f32.mrb[0].mxu0
        %v460 = vadd.f32 0.0, %v459
        %v461 = vpop.f32.mrb[0].mxu0
        %462 = vmatprep.mubr.bf16.mxu0 0
        %463 = vmatmul.mubr.bf16.gmra.mrb[0].mxu0 %v359
        %v464 = vpop.f32.mrb[0].mxu0
        %v465 = vadd.f32 0.0, %v464
        %v466 = vpop.f32.mrb[0].mxu0
        %v467 = vpop.f32.mrb[0].mxu0
        %v468 = vadd.f32 0.0, %v467
        %v469 = vpop.f32.mrb[0].mxu0
        %470 = vmatprep.mubr.bf16.mxu0 0
        %471 = vmatmul.mubr.bf16.gmra.mrb[0].mxu0 %v360
        %v472 = vpop.f32.mrb[0].mxu0
        %v473 = vadd.f32 0.0, %v472
        %v474 = vpop.f32.mrb[0].mxu0
        %v475 = vpop.f32.mrb[0].mxu0
        %v476 = vadd.f32 0.0, %v475
        %v477 = vpop.f32.mrb[0].mxu0
        %478 = vmatprep.mubr.bf16.mxu0 0
        %479 = vmatmul.mubr.bf16.gmra.mrb[0].mxu0 %v361
        %v480 = vpop.f32.mrb[0].mxu0
        %v481 = vadd.f32 0.0, %v480
        %v482 = vpop.f32.mrb[0].mxu0
        %v483 = vpop.f32.mrb[0].mxu0
        %v484 = vadd.f32 0.0, %v483
        %v485 = vpop.f32.mrb[0].mxu0
        %486 = vmatprep.mubr.bf16.mxu0 0
        %487 = vmatmul.mubr.bf16.gmra.mrb[0].mxu0 %v362
        %v488 = vpop.f32.mrb[0].mxu0
        %v489 = vadd.f32 0.0, %v488
        %v490 = vpop.f32.mrb[0].mxu0
        %v491 = vpop.f32.mrb[0].mxu0
        %v492 = vadd.f32 0.0, %v491
        %v493 = vpop.f32.mrb[0].mxu0
        %494 = vmatprep.mubr.bf16.mxu0 0
        %495 = vmatmul.mubr.bf16.gmra.mrb[0].mxu0 %v363
        %v496 = vpop.f32.mrb[0].mxu0
        %v497 = vadd.f32 0.0, %v496
        %v498 = vpop.f32.mrb[0].mxu0
        %v499 = vpop.f32.mrb[0].mxu0
        %v500 = vadd.f32 0.0, %v499
        %v501 = vpop.f32.mrb[0].mxu0
        %502 = vmatprep.mubr.bf16.mxu0 0
        %503 = vmatmul.mubr.bf16.gmra.mrb[0].mxu0 %v364
        %v504 = vpop.f32.mrb[0].mxu0
        %v505 = vadd.f32 0.0, %v504
        %v506 = vpop.f32.mrb[0].mxu0
        %v507 = vpop.f32.mrb[0].mxu0
        %v508 = vadd.f32 0.0, %v507
        %v509 = vpop.f32.mrb[0].mxu0
        %510 = vmatprep.mubr.bf16.mxu0 0
        %511 = vmatmul.mubr.bf16.gmra.mrb[0].mxu0 %v365
        %v512 = vpop.f32.mrb[0].mxu0
        %v513 = vadd.f32 0.0, %v512
        %v514 = vpop.f32.mrb[0].mxu0
        %v515 = vpop.f32.mrb[0].mxu0
        %v516 = vadd.f32 0.0, %v515
        %v517 = vpop.f32.mrb[0].mxu0
        %518 = vdwg.mxu0
        %519 = vst [vmem:[%s218] sm:$0xff] %v457
        %520 = vst [vmem:[%s218 + $0x8] sm:$0xff] %v460
        %521 = vst [vmem:[%s218 + $0x10] sm:$0xff] %v465
        %522 = vst [vmem:[%s218 + $0x18] sm:$0xff] %v468
        %523 = vst [vmem:[%s218 + $0x20] sm:$0xff] %v473
        %524 = vst [vmem:[%s218 + $0x28] sm:$0xff] %v476
        %525 = vst [vmem:[%s218 + $0x30] sm:$0xff] %v481
        %526 = vst [vmem:[%s218 + $0x38] sm:$0xff] %v484
        %527 = vst [vmem:[%s218 + $0x40] sm:$0xff] %v489
        %528 = vst [vmem:[%s218 + $0x48] sm:$0xff] %v492
        %529 = vst [vmem:[%s218 + $0x50] sm:$0xff] %v497
        %530 = vst [vmem:[%s218 + $0x58] sm:$0xff] %v500
        %531 = vst [vmem:[%s218 + $0x60] sm:$0xff] %v505
        %532 = vst [vmem:[%s218 + $0x68] sm:$0xff] %v508
        %533 = vst [vmem:[%s218 + $0x70] sm:$0xff] %v513
        %534 = vst [vmem:[%s218 + $0x78] sm:$0xff] %v516
        %p535 = scmp.eq.s32.totalorder %s24, %s25
        // Predicated region
        $region37: #{_lambda_.1} parent=27 // pred_check
          %p536 = pneg %p535
        $region38: #{_lambda_.1} parent=27 // pred_check_branch
          %538 = sbr.rel (%p536) target = $region40
        $region39: #{_lambda_.1} parent=27 // pred_region
          %v539 = vlaneseq
          %v540 = vshrl.u32 %v539, 7
          %v541 = vadd.s32 %v540, 8
          %v542 = vadd.s32 %v540, 16
          %v543 = vadd.s32 %v540, 24
          %v544 = vadd.s32 %v540, 32
          %v545 = vadd.s32 %v540, 40
          %v546 = vadd.s32 %v540, 48
          %v547 = vadd.s32 %v540, 56
          %v548 = vadd.s32 %v540, 64
          %v549 = vadd.s32 %v540, 72
          %v550 = vadd.s32 %v540, 80
          %v551 = vadd.s32 %v540, 88
          %v552 = vadd.s32 %v540, 96
          %v553 = vadd.s32 %v540, 104
          %v554 = vadd.s32 %v540, 112
          %v555 = vadd.s32 %v540, 120
          %v556 = vlaneseq
          %v557 = vand.u32 %v556, 127
          %vm558 = vcmp.eq.s32.totalorder %v540, %v557
          %vm559 = vcmp.eq.s32.totalorder %v541, %v557
          %vm560 = vcmp.eq.s32.totalorder %v542, %v557
          %vm561 = vcmp.eq.s32.totalorder %v543, %v557
          %vm562 = vcmp.eq.s32.totalorder %v544, %v557
          %vm563 = vcmp.eq.s32.totalorder %v545, %v557
          %vm564 = vcmp.eq.s32.totalorder %v546, %v557
          %vm565 = vcmp.eq.s32.totalorder %v547, %v557
          %vm566 = vcmp.eq.s32.totalorder %v548, %v557
          %vm567 = vcmp.eq.s32.totalorder %v549, %v557
          %vm568 = vcmp.eq.s32.totalorder %v550, %v557
          %vm569 = vcmp.eq.s32.totalorder %v551, %v557
          %vm570 = vcmp.eq.s32.totalorder %v552, %v557
          %vm571 = vcmp.eq.s32.totalorder %v553, %v557
          %vm572 = vcmp.eq.s32.totalorder %v554, %v557
          %vm573 = vcmp.eq.s32.totalorder %v555, %v557
          %v574 = vsel %vm558, %v457, 0.0
          %v575 = vsel %vm559, %v460, 0.0
          %v576 = vsel %vm560, %v465, 0.0
          %v577 = vsel %vm561, %v468, 0.0
          %v578 = vsel %vm562, %v473, 0.0
          %v579 = vsel %vm563, %v476, 0.0
          %v580 = vsel %vm564, %v481, 0.0
          %v581 = vsel %vm565, %v484, 0.0
          %v582 = vsel %vm566, %v489, 0.0
          %v583 = vsel %vm567, %v492, 0.0
          %v584 = vsel %vm568, %v497, 0.0
          %v585 = vsel %vm569, %v500, 0.0
          %v586 = vsel %vm570, %v505, 0.0
          %v587 = vsel %vm571, %v508, 0.0
          %v588 = vsel %vm572, %v513, 0.0
          %v589 = vsel %vm573, %v516, 0.0
          %590 = vadd.xlane.f32.xlu0 %v574
          %v591 = vpop.xlane.xlu0 %590
          %592 = vadd.xlane.f32.xlu0 %v575
          %v593 = vpop.xlane.xlu0 %592
          %594 = vadd.xlane.f32.xlu0 %v576
          %v595 = vpop.xlane.xlu0 %594
          %596 = vadd.xlane.f32.xlu0 %v577
          %v597 = vpop.xlane.xlu0 %596
          %598 = vadd.xlane.f32.xlu0 %v578
          %v599 = vpop.xlane.xlu0 %598
          %600 = vadd.xlane.f32.xlu0 %v579
          %v601 = vpop.xlane.xlu0 %600
          %602 = vadd.xlane.f32.xlu0 %v580
          %v603 = vpop.xlane.xlu0 %602
          %604 = vadd.xlane.f32.xlu0 %v581
          %v605 = vpop.xlane.xlu0 %604
          %606 = vadd.xlane.f32.xlu0 %v582
          %v607 = vpop.xlane.xlu0 %606
          %608 = vadd.xlane.f32.xlu0 %v583
          %v609 = vpop.xlane.xlu0 %608
          %610 = vadd.xlane.f32.xlu0 %v584
          %v611 = vpop.xlane.xlu0 %610
          %612 = vadd.xlane.f32.xlu0 %v585
          %v613 = vpop.xlane.xlu0 %612
          %614 = vadd.xlane.f32.xlu0 %v586
          %v615 = vpop.xlane.xlu0 %614
          %616 = vadd.xlane.f32.xlu0 %v587
          %v617 = vpop.xlane.xlu0 %616
          %618 = vadd.xlane.f32.xlu0 %v588
          %v619 = vpop.xlane.xlu0 %618
          %620 = vadd.xlane.f32.xlu0 %v589
          %v621 = vpop.xlane.xlu0 %620
          %vm622 = vcmask 7168
          %623 = vst.msk [vmem:[#allocation4] sm:$0xff] %vm622, %v591
          %624 = vst.msk [vmem:[#allocation4 + $0x8] sm:$0xff] %vm622, %v593
          %625 = vst.msk [vmem:[#allocation4 + $0x10] sm:$0xff] %vm622, %v595
          %626 = vst.msk [vmem:[#allocation4 + $0x18] sm:$0xff] %vm622, %v597
          %627 = vst.msk [vmem:[#allocation4 + $0x20] sm:$0xff] %vm622, %v599
          %628 = vst.msk [vmem:[#allocation4 + $0x28] sm:$0xff] %vm622, %v601
          %629 = vst.msk [vmem:[#allocation4 + $0x30] sm:$0xff] %vm622, %v603
          %630 = vst.msk [vmem:[#allocation4 + $0x38] sm:$0xff] %vm622, %v605
          %631 = vst.msk [vmem:[#allocation4 + $0x40] sm:$0xff] %vm622, %v607
          %632 = vst.msk [vmem:[#allocation4 + $0x48] sm:$0xff] %vm622, %v609
          %633 = vst.msk [vmem:[#allocation4 + $0x50] sm:$0xff] %vm622, %v611
          %634 = vst.msk [vmem:[#allocation4 + $0x58] sm:$0xff] %vm622, %v613
          %635 = vst.msk [vmem:[#allocation4 + $0x60] sm:$0xff] %vm622, %v615
          %636 = vst.msk [vmem:[#allocation4 + $0x68] sm:$0xff] %vm622, %v617
          %637 = vst.msk [vmem:[#allocation4 + $0x70] sm:$0xff] %vm622, %v619
          %638 = vst.msk [vmem:[#allocation4 + $0x78] sm:$0xff] %vm622, %v621
          %v639 = vadd.f32 %v574, %v575
          %v640 = vadd.f32 %v639, %v576
          %v641 = vadd.f32 %v640, %v577
          %v642 = vadd.f32 %v641, %v578
          %v643 = vadd.f32 %v642, %v579
          %v644 = vadd.f32 %v643, %v580
          %v645 = vadd.f32 %v644, %v581
          %v646 = vadd.f32 %v645, %v582
          %v647 = vadd.f32 %v646, %v583
          %v648 = vadd.f32 %v647, %v584
          %v649 = vadd.f32 %v648, %v585
          %v650 = vadd.f32 %v649, %v586
          %v651 = vadd.f32 %v650, %v587
          %v652 = vadd.f32 %v651, %v588
          %v653 = vadd.f32 %v652, %v589
          %v654 = vrot.slane %v653, 4
          %v655 = vadd.f32 %v653, %v654
          %v656 = vrot.slane %v655, 2
          %v657 = vadd.f32 %v655, %v656
          %v658 = vrot.slane %v657, 1
          %v659 = vadd.f32 %v657, %v658
          %s660 = scalar_lea.vmem [#allocation7], %s24
          %661 = vst [vmem:[%s660] sm:$0x1] %v659
        $region40: #{_lambda_.1} parent=27 // pred_fallthru
          _
        %v662 = vld [vmem:[#allocation2] sm:$0xff]
        %v663 = vld [vmem:[#allocation2 + $0x8] sm:$0xff]
        %v664 = vld [vmem:[#allocation2 + $0x10] sm:$0xff]
        %v665 = vld [vmem:[#allocation2 + $0x18] sm:$0xff]
        %v666 = vld [vmem:[#allocation2 + $0x20] sm:$0xff]
        %v667 = vld [vmem:[#allocation2 + $0x28] sm:$0xff]
        %v668 = vld [vmem:[#allocation2 + $0x30] sm:$0xff]
        %v669 = vld [vmem:[#allocation2 + $0x38] sm:$0xff]
        %v670 = vld [vmem:[#allocation2 + $0x40] sm:$0xff]
        %v671 = vld [vmem:[#allocation2 + $0x48] sm:$0xff]
        %v672 = vld [vmem:[#allocation2 + $0x50] sm:$0xff]
        %v673 = vld [vmem:[#allocation2 + $0x58] sm:$0xff]
        %v674 = vld [vmem:[#allocation2 + $0x60] sm:$0xff]
        %v675 = vld [vmem:[#allocation2 + $0x68] sm:$0xff]
        %v676 = vld [vmem:[#allocation2 + $0x70] sm:$0xff]
        %v677 = vld [vmem:[#allocation2 + $0x78] sm:$0xff]
        %678 = vmax.xlane.f32.xlu0 %v457
        %v679 = vpop.xlane.xlu0 %678
        %680 = vmax.xlane.f32.xlu0 %v460
        %v681 = vpop.xlane.xlu0 %680
        %682 = vmax.xlane.f32.xlu0 %v465
        %v683 = vpop.xlane.xlu0 %682
        %684 = vmax.xlane.f32.xlu0 %v468
        %v685 = vpop.xlane.xlu0 %684
        %686 = vmax.xlane.f32.xlu0 %v473
        %v687 = vpop.xlane.xlu0 %686
        %688 = vmax.xlane.f32.xlu0 %v476
        %v689 = vpop.xlane.xlu0 %688
        %690 = vmax.xlane.f32.xlu0 %v481
        %v691 = vpop.xlane.xlu0 %690
        %692 = vmax.xlane.f32.xlu0 %v484
        %v693 = vpop.xlane.xlu0 %692
        %694 = vmax.xlane.f32.xlu0 %v489
        %v695 = vpop.xlane.xlu0 %694
        %696 = vmax.xlane.f32.xlu0 %v492
        %v697 = vpop.xlane.xlu0 %696
        %698 = vmax.xlane.f32.xlu0 %v497
        %v699 = vpop.xlane.xlu0 %698
        %700 = vmax.xlane.f32.xlu0 %v500
        %v701 = vpop.xlane.xlu0 %700
        %702 = vmax.xlane.f32.xlu0 %v505
        %v703 = vpop.xlane.xlu0 %702
        %704 = vmax.xlane.f32.xlu0 %v508
        %v705 = vpop.xlane.xlu0 %704
        %706 = vmax.xlane.f32.xlu0 %v513
        %v707 = vpop.xlane.xlu0 %706
        %708 = vmax.xlane.f32.xlu0 %v516
        %v709 = vpop.xlane.xlu0 %708
        %v710 = vmax.f32 %v662, %v679
        %v711 = vmax.f32 %v663, %v681
        %v712 = vmax.f32 %v664, %v683
        %v713 = vmax.f32 %v665, %v685
        %v714 = vmax.f32 %v666, %v687
        %v715 = vmax.f32 %v667, %v689
        %v716 = vmax.f32 %v668, %v691
        %v717 = vmax.f32 %v669, %v693
        %v718 = vmax.f32 %v670, %v695
        %v719 = vmax.f32 %v671, %v697
        %v720 = vmax.f32 %v672, %v699
        %v721 = vmax.f32 %v673, %v701
        %v722 = vmax.f32 %v674, %v703
        %v723 = vmax.f32 %v675, %v705
        %v724 = vmax.f32 %v676, %v707
        %v725 = vmax.f32 %v677, %v709
        %727 = vset.pattern.permute.xlu0 0
        %728 = vperm.xlu0 %727, %v710
        %v729 = vpop.permute.xlu0 %728
        %732 = vset.pattern.permute.xlu0 0
        %733 = vperm.xlu0 %732, %v711
        %v734 = vpop.permute.xlu0 %733
        %737 = vset.pattern.permute.xlu0 0
        %738 = vperm.xlu0 %737, %v712
        %v739 = vpop.permute.xlu0 %738
        %742 = vset.pattern.permute.xlu0 0
        %743 = vperm.xlu0 %742, %v713
        %v744 = vpop.permute.xlu0 %743
        %747 = vset.pattern.permute.xlu0 0
        %748 = vperm.xlu0 %747, %v714
        %v749 = vpop.permute.xlu0 %748
        %752 = vset.pattern.permute.xlu0 0
        %753 = vperm.xlu0 %752, %v715
        %v754 = vpop.permute.xlu0 %753
        %757 = vset.pattern.permute.xlu0 0
        %758 = vperm.xlu0 %757, %v716
        %v759 = vpop.permute.xlu0 %758
        %762 = vset.pattern.permute.xlu0 0
        %763 = vperm.xlu0 %762, %v717
        %v764 = vpop.permute.xlu0 %763
        %767 = vset.pattern.permute.xlu0 0
        %768 = vperm.xlu0 %767, %v718
        %v769 = vpop.permute.xlu0 %768
        %772 = vset.pattern.permute.xlu0 0
        %773 = vperm.xlu0 %772, %v719
        %v774 = vpop.permute.xlu0 %773
        %777 = vset.pattern.permute.xlu0 0
        %778 = vperm.xlu0 %777, %v720
        %v779 = vpop.permute.xlu0 %778
        %782 = vset.pattern.permute.xlu0 0
        %783 = vperm.xlu0 %782, %v721
        %v784 = vpop.permute.xlu0 %783
        %787 = vset.pattern.permute.xlu0 0
        %788 = vperm.xlu0 %787, %v722
        %v789 = vpop.permute.xlu0 %788
        %792 = vset.pattern.permute.xlu0 0
        %793 = vperm.xlu0 %792, %v723
        %v794 = vpop.permute.xlu0 %793
        %797 = vset.pattern.permute.xlu0 0
        %798 = vperm.xlu0 %797, %v724
        %v799 = vpop.permute.xlu0 %798
        %802 = vset.pattern.permute.xlu0 0
        %803 = vperm.xlu0 %802, %v725
        %v804 = vpop.permute.xlu0 %803
        %v806 = vsub.f32 %v457, %v729
        %v807 = vsub.f32 %v460, %v734
        %v808 = vsub.f32 %v465, %v739
        %v809 = vsub.f32 %v468, %v744
        %v810 = vsub.f32 %v473, %v749
        %v811 = vsub.f32 %v476, %v754
        %v812 = vsub.f32 %v481, %v759
        %v813 = vsub.f32 %v484, %v764
        %v814 = vsub.f32 %v489, %v769
        %v815 = vsub.f32 %v492, %v774
        %v816 = vsub.f32 %v497, %v779
        %v817 = vsub.f32 %v500, %v784
        %v818 = vsub.f32 %v505, %v789
        %v819 = vsub.f32 %v508, %v794
        %v820 = vsub.f32 %v513, %v799
        %v821 = vsub.f32 %v516, %v804
        %v822 = vmul.f32 %v806, 1.442695
        %v823 = vpow.pop %v822
        %v824 = vmul.f32 %v807, 1.442695
        %v825 = vpow.pop %v824
        %v826 = vmul.f32 %v808, 1.442695
        %v827 = vpow.pop %v826
        %v828 = vmul.f32 %v809, 1.442695
        %v829 = vpow.pop %v828
        %v830 = vmul.f32 %v810, 1.442695
        %v831 = vpow.pop %v830
        %v832 = vmul.f32 %v811, 1.442695
        %v833 = vpow.pop %v832
        %v834 = vmul.f32 %v812, 1.442695
        %v835 = vpow.pop %v834
        %v836 = vmul.f32 %v813, 1.442695
        %v837 = vpow.pop %v836
        %v838 = vmul.f32 %v814, 1.442695
        %v839 = vpow.pop %v838
        %v840 = vmul.f32 %v815, 1.442695
        %v841 = vpow.pop %v840
        %v842 = vmul.f32 %v816, 1.442695
        %v843 = vpow.pop %v842
        %v844 = vmul.f32 %v817, 1.442695
        %v845 = vpow.pop %v844
        %v846 = vmul.f32 %v818, 1.442695
        %v847 = vpow.pop %v846
        %v848 = vmul.f32 %v819, 1.442695
        %v849 = vpow.pop %v848
        %v850 = vmul.f32 %v820, 1.442695
        %v851 = vpow.pop %v850
        %v852 = vmul.f32 %v821, 1.442695
        %v853 = vpow.pop %v852
        %v854 = vsub.f32 %v662, %v710
        %v855 = vsub.f32 %v663, %v711
        %v856 = vsub.f32 %v664, %v712
        %v857 = vsub.f32 %v665, %v713
        %v858 = vsub.f32 %v666, %v714
        %v859 = vsub.f32 %v667, %v715
        %v860 = vsub.f32 %v668, %v716
        %v861 = vsub.f32 %v669, %v717
        %v862 = vsub.f32 %v670, %v718
        %v863 = vsub.f32 %v671, %v719
        %v864 = vsub.f32 %v672, %v720
        %v865 = vsub.f32 %v673, %v721
        %v866 = vsub.f32 %v674, %v722
        %v867 = vsub.f32 %v675, %v723
        %v868 = vsub.f32 %v676, %v724
        %v869 = vsub.f32 %v677, %v725
        %v870 = vmul.f32 %v854, 1.442695
        %v871 = vpow.pop %v870
        %v872 = vmul.f32 %v855, 1.442695
        %v873 = vpow.pop %v872
        %v874 = vmul.f32 %v856, 1.442695
        %v875 = vpow.pop %v874
        %v876 = vmul.f32 %v857, 1.442695
        %v877 = vpow.pop %v876
        %v878 = vmul.f32 %v858, 1.442695
        %v879 = vpow.pop %v878
        %v880 = vmul.f32 %v859, 1.442695
        %v881 = vpow.pop %v880
        %v882 = vmul.f32 %v860, 1.442695
        %v883 = vpow.pop %v882
        %v884 = vmul.f32 %v861, 1.442695
        %v885 = vpow.pop %v884
        %v886 = vmul.f32 %v862, 1.442695
        %v887 = vpow.pop %v886
        %v888 = vmul.f32 %v863, 1.442695
        %v889 = vpow.pop %v888
        %v890 = vmul.f32 %v864, 1.442695
        %v891 = vpow.pop %v890
        %v892 = vmul.f32 %v865, 1.442695
        %v893 = vpow.pop %v892
        %v894 = vmul.f32 %v866, 1.442695
        %v895 = vpow.pop %v894
        %v896 = vmul.f32 %v867, 1.442695
        %v897 = vpow.pop %v896
        %v898 = vmul.f32 %v868, 1.442695
        %v899 = vpow.pop %v898
        %v900 = vmul.f32 %v869, 1.442695
        %v901 = vpow.pop %v900
        %v902 = vld [vmem:[#allocation3] sm:$0xff]
        %v903 = vld [vmem:[#allocation3 + $0x8] sm:$0xff]
        %v904 = vld [vmem:[#allocation3 + $0x10] sm:$0xff]
        %v905 = vld [vmem:[#allocation3 + $0x18] sm:$0xff]
        %v906 = vld [vmem:[#allocation3 + $0x20] sm:$0xff]
        %v907 = vld [vmem:[#allocation3 + $0x28] sm:$0xff]
        %v908 = vld [vmem:[#allocation3 + $0x30] sm:$0xff]
        %v909 = vld [vmem:[#allocation3 + $0x38] sm:$0xff]
        %v910 = vld [vmem:[#allocation3 + $0x40] sm:$0xff]
        %v911 = vld [vmem:[#allocation3 + $0x48] sm:$0xff]
        %v912 = vld [vmem:[#allocation3 + $0x50] sm:$0xff]
        %v913 = vld [vmem:[#allocation3 + $0x58] sm:$0xff]
        %v914 = vld [vmem:[#allocation3 + $0x60] sm:$0xff]
        %v915 = vld [vmem:[#allocation3 + $0x68] sm:$0xff]
        %v916 = vld [vmem:[#allocation3 + $0x70] sm:$0xff]
        %v917 = vld [vmem:[#allocation3 + $0x78] sm:$0xff]
        %v918 = vmul.f32 %v871, %v902
        %v919 = vmul.f32 %v873, %v903
        %v920 = vmul.f32 %v875, %v904
        %v921 = vmul.f32 %v877, %v905
        %v922 = vmul.f32 %v879, %v906
        %v923 = vmul.f32 %v881, %v907
        %v924 = vmul.f32 %v883, %v908
        %v925 = vmul.f32 %v885, %v909
        %v926 = vmul.f32 %v887, %v910
        %v927 = vmul.f32 %v889, %v911
        %v928 = vmul.f32 %v891, %v912
        %v929 = vmul.f32 %v893, %v913
        %v930 = vmul.f32 %v895, %v914
        %v931 = vmul.f32 %v897, %v915
        %v932 = vmul.f32 %v899, %v916
        %v933 = vmul.f32 %v901, %v917
        %934 = vadd.xlane.f32.xlu0 %v823
        %v935 = vpop.xlane.xlu0 %934
        %936 = vadd.xlane.f32.xlu0 %v825
        %v937 = vpop.xlane.xlu0 %936
        %938 = vadd.xlane.f32.xlu0 %v827
        %v939 = vpop.xlane.xlu0 %938
        %940 = vadd.xlane.f32.xlu0 %v829
        %v941 = vpop.xlane.xlu0 %940
        %942 = vadd.xlane.f32.xlu0 %v831
        %v943 = vpop.xlane.xlu0 %942
        %944 = vadd.xlane.f32.xlu0 %v833
        %v945 = vpop.xlane.xlu0 %944
        %946 = vadd.xlane.f32.xlu0 %v835
        %v947 = vpop.xlane.xlu0 %946
        %948 = vadd.xlane.f32.xlu0 %v837
        %v949 = vpop.xlane.xlu0 %948
        %950 = vadd.xlane.f32.xlu0 %v839
        %v951 = vpop.xlane.xlu0 %950
        %952 = vadd.xlane.f32.xlu0 %v841
        %v953 = vpop.xlane.xlu0 %952
        %954 = vadd.xlane.f32.xlu0 %v843
        %v955 = vpop.xlane.xlu0 %954
        %956 = vadd.xlane.f32.xlu0 %v845
        %v957 = vpop.xlane.xlu0 %956
        %958 = vadd.xlane.f32.xlu0 %v847
        %v959 = vpop.xlane.xlu0 %958
        %960 = vadd.xlane.f32.xlu0 %v849
        %v961 = vpop.xlane.xlu0 %960
        %962 = vadd.xlane.f32.xlu0 %v851
        %v963 = vpop.xlane.xlu0 %962
        %964 = vadd.xlane.f32.xlu0 %v853
        %v965 = vpop.xlane.xlu0 %964
        %v966 = vadd.f32 %v918, %v935
        %v967 = vadd.f32 %v919, %v937
        %v968 = vadd.f32 %v920, %v939
        %v969 = vadd.f32 %v921, %v941
        %v970 = vadd.f32 %v922, %v943
        %v971 = vadd.f32 %v923, %v945
        %v972 = vadd.f32 %v924, %v947
        %v973 = vadd.f32 %v925, %v949
        %v974 = vadd.f32 %v926, %v951
        %v975 = vadd.f32 %v927, %v953
        %v976 = vadd.f32 %v928, %v955
        %v977 = vadd.f32 %v929, %v957
        %v978 = vadd.f32 %v930, %v959
        %v979 = vadd.f32 %v931, %v961
        %v980 = vadd.f32 %v932, %v963
        %v981 = vadd.f32 %v933, %v965
        %vm982 = vcmask 7168
        %983 = vst.msk [vmem:[#allocation3] sm:$0xff] %vm982, %v966
        %984 = vst.msk [vmem:[#allocation3 + $0x8] sm:$0xff] %vm982, %v967
        %985 = vst.msk [vmem:[#allocation3 + $0x10] sm:$0xff] %vm982, %v968
        %986 = vst.msk [vmem:[#allocation3 + $0x18] sm:$0xff] %vm982, %v969
        %987 = vst.msk [vmem:[#allocation3 + $0x20] sm:$0xff] %vm982, %v970
        %988 = vst.msk [vmem:[#allocation3 + $0x28] sm:$0xff] %vm982, %v971
        %989 = vst.msk [vmem:[#allocation3 + $0x30] sm:$0xff] %vm982, %v972
        %990 = vst.msk [vmem:[#allocation3 + $0x38] sm:$0xff] %vm982, %v973
        %991 = vst.msk [vmem:[#allocation3 + $0x40] sm:$0xff] %vm982, %v974
        %992 = vst.msk [vmem:[#allocation3 + $0x48] sm:$0xff] %vm982, %v975
        %993 = vst.msk [vmem:[#allocation3 + $0x50] sm:$0xff] %vm982, %v976
        %994 = vst.msk [vmem:[#allocation3 + $0x58] sm:$0xff] %vm982, %v977
        %995 = vst.msk [vmem:[#allocation3 + $0x60] sm:$0xff] %vm982, %v978
        %996 = vst.msk [vmem:[#allocation3 + $0x68] sm:$0xff] %vm982, %v979
        %997 = vst.msk [vmem:[#allocation3 + $0x70] sm:$0xff] %vm982, %v980
        %998 = vst.msk [vmem:[#allocation3 + $0x78] sm:$0xff] %vm982, %v981
        %999 = vst.msk [vmem:[#allocation2] sm:$0xff] %vm982, %v710
        %1000 = vst.msk [vmem:[#allocation2 + $0x8] sm:$0xff] %vm982, %v711
        %1001 = vst.msk [vmem:[#allocation2 + $0x10] sm:$0xff] %vm982, %v712
        %1002 = vst.msk [vmem:[#allocation2 + $0x18] sm:$0xff] %vm982, %v713
        %1003 = vst.msk [vmem:[#allocation2 + $0x20] sm:$0xff] %vm982, %v714
        %1004 = vst.msk [vmem:[#allocation2 + $0x28] sm:$0xff] %vm982, %v715
        %1005 = vst.msk [vmem:[#allocation2 + $0x30] sm:$0xff] %vm982, %v716
        %1006 = vst.msk [vmem:[#allocation2 + $0x38] sm:$0xff] %vm982, %v717
        %1007 = vst.msk [vmem:[#allocation2 + $0x40] sm:$0xff] %vm982, %v718
        %1008 = vst.msk [vmem:[#allocation2 + $0x48] sm:$0xff] %vm982, %v719
        %1009 = vst.msk [vmem:[#allocation2 + $0x50] sm:$0xff] %vm982, %v720
        %1010 = vst.msk [vmem:[#allocation2 + $0x58] sm:$0xff] %vm982, %v721
        %1011 = vst.msk [vmem:[#allocation2 + $0x60] sm:$0xff] %vm982, %v722
        %1012 = vst.msk [vmem:[#allocation2 + $0x68] sm:$0xff] %vm982, %v723
        %1013 = vst.msk [vmem:[#allocation2 + $0x70] sm:$0xff] %vm982, %v724
        %1014 = vst.msk [vmem:[#allocation2 + $0x78] sm:$0xff] %vm982, %v725
        %v1015 = vsel %vm982, %v710, -inf
        %v1016 = vsel %vm982, %v711, -inf
        %v1017 = vsel %vm982, %v712, -inf
        %v1018 = vsel %vm982, %v713, -inf
        %v1019 = vsel %vm982, %v714, -inf
        %v1020 = vmax.f32 %v1015, %v1019
        %v1021 = vsel %vm982, %v715, -inf
        %v1022 = vmax.f32 %v1016, %v1021
        %v1023 = vsel %vm982, %v716, -inf
        %v1024 = vmax.f32 %v1017, %v1023
        %v1025 = vsel %vm982, %v717, -inf
        %v1026 = vmax.f32 %v1018, %v1025
        %v1027 = vsel %vm982, %v718, -inf
        %v1028 = vmax.f32 %v1020, %v1027
        %v1029 = vsel %vm982, %v719, -inf
        %v1030 = vmax.f32 %v1022, %v1029
        %v1031 = vsel %vm982, %v720, -inf
        %v1032 = vmax.f32 %v1024, %v1031
        %v1033 = vsel %vm982, %v721, -inf
        %v1034 = vmax.f32 %v1026, %v1033
        %v1035 = vsel %vm982, %v722, -inf
        %v1036 = vmax.f32 %v1028, %v1035
        %v1037 = vsel %vm982, %v723, -inf
        %v1038 = vmax.f32 %v1030, %v1037
        %v1039 = vsel %vm982, %v724, -inf
        %v1040 = vmax.f32 %v1032, %v1039
        %v1041 = vsel %vm982, %v725, -inf
        %v1042 = vmax.f32 %v1034, %v1041
        %v1043 = vmax.f32 %v1036, %v1038
        %v1044 = vmax.f32 %v1040, %v1042
        %v1045 = vmax.f32 %v1043, %v1044
        %v1046 = vrot.slane %v1045, 4
        %v1047 = vmax.f32 %v1045, %v1046
        %v1048 = vrot.slane %v1047, 2
        %v1049 = vmax.f32 %v1047, %v1048
        %v1050 = vrot.slane %v1049, 1
        %v1051 = vmax.f32 %v1049, %v1050
        %v1052 = vsub.f32 %v710, %v1051
        %v1053 = vsub.f32 %v711, %v1051
        %v1054 = vsub.f32 %v712, %v1051
        %v1055 = vsub.f32 %v713, %v1051
        %v1056 = vsub.f32 %v714, %v1051
        %v1057 = vsub.f32 %v715, %v1051
        %v1058 = vsub.f32 %v716, %v1051
        %v1059 = vsub.f32 %v717, %v1051
        %v1060 = vsub.f32 %v718, %v1051
        %v1061 = vsub.f32 %v719, %v1051
        %v1062 = vsub.f32 %v720, %v1051
        %v1063 = vsub.f32 %v721, %v1051
        %v1064 = vsub.f32 %v722, %v1051
        %v1065 = vsub.f32 %v723, %v1051
        %v1066 = vsub.f32 %v724, %v1051
        %v1067 = vsub.f32 %v725, %v1051
        %v1068 = vmul.f32 %v1052, 1.442695
        %v1069 = vpow.pop %v1068
        %v1070 = vmul.f32 %v1053, 1.442695
        %v1071 = vpow.pop %v1070
        %v1072 = vmul.f32 %v1054, 1.442695
        %v1073 = vpow.pop %v1072
        %v1074 = vmul.f32 %v1055, 1.442695
        %v1075 = vpow.pop %v1074
        %v1076 = vmul.f32 %v1056, 1.442695
        %v1077 = vpow.pop %v1076
        %v1078 = vmul.f32 %v1057, 1.442695
        %v1079 = vpow.pop %v1078
        %v1080 = vmul.f32 %v1058, 1.442695
        %v1081 = vpow.pop %v1080
        %v1082 = vmul.f32 %v1059, 1.442695
        %v1083 = vpow.pop %v1082
        %v1084 = vmul.f32 %v1060, 1.442695
        %v1085 = vpow.pop %v1084
        %v1086 = vmul.f32 %v1061, 1.442695
        %v1087 = vpow.pop %v1086
        %v1088 = vmul.f32 %v1062, 1.442695
        %v1089 = vpow.pop %v1088
        %v1090 = vmul.f32 %v1063, 1.442695
        %v1091 = vpow.pop %v1090
        %v1092 = vmul.f32 %v1064, 1.442695
        %v1093 = vpow.pop %v1092
        %v1094 = vmul.f32 %v1065, 1.442695
        %v1095 = vpow.pop %v1094
        %v1096 = vmul.f32 %v1066, 1.442695
        %v1097 = vpow.pop %v1096
        %v1098 = vmul.f32 %v1067, 1.442695
        %v1099 = vpow.pop %v1098
        %1101 = vset.pattern.permute.xlu0 0
        %1102 = vperm.xlu0 %1101, %v1069
        %v1103 = vpop.permute.xlu0 %1102
        %1106 = vset.pattern.permute.xlu0 0
        %1107 = vperm.xlu0 %1106, %v1071
        %v1108 = vpop.permute.xlu0 %1107
        %1111 = vset.pattern.permute.xlu0 0
        %1112 = vperm.xlu0 %1111, %v1073
        %v1113 = vpop.permute.xlu0 %1112
        %1116 = vset.pattern.permute.xlu0 0
        %1117 = vperm.xlu0 %1116, %v1075
        %v1118 = vpop.permute.xlu0 %1117
        %1121 = vset.pattern.permute.xlu0 0
        %1122 = vperm.xlu0 %1121, %v1077
        %v1123 = vpop.permute.xlu0 %1122
        %1126 = vset.pattern.permute.xlu0 0
        %1127 = vperm.xlu0 %1126, %v1079
        %v1128 = vpop.permute.xlu0 %1127
        %1131 = vset.pattern.permute.xlu0 0
        %1132 = vperm.xlu0 %1131, %v1081
        %v1133 = vpop.permute.xlu0 %1132
        %1136 = vset.pattern.permute.xlu0 0
        %1137 = vperm.xlu0 %1136, %v1083
        %v1138 = vpop.permute.xlu0 %1137
        %1141 = vset.pattern.permute.xlu0 0
        %1142 = vperm.xlu0 %1141, %v1085
        %v1143 = vpop.permute.xlu0 %1142
        %1146 = vset.pattern.permute.xlu0 0
        %1147 = vperm.xlu0 %1146, %v1087
        %v1148 = vpop.permute.xlu0 %1147
        %1151 = vset.pattern.permute.xlu0 0
        %1152 = vperm.xlu0 %1151, %v1089
        %v1153 = vpop.permute.xlu0 %1152
        %1156 = vset.pattern.permute.xlu0 0
        %1157 = vperm.xlu0 %1156, %v1091
        %v1158 = vpop.permute.xlu0 %1157
        %1161 = vset.pattern.permute.xlu0 0
        %1162 = vperm.xlu0 %1161, %v1093
        %v1163 = vpop.permute.xlu0 %1162
        %1166 = vset.pattern.permute.xlu0 0
        %1167 = vperm.xlu0 %1166, %v1095
        %v1168 = vpop.permute.xlu0 %1167
        %1171 = vset.pattern.permute.xlu0 0
        %1172 = vperm.xlu0 %1171, %v1097
        %v1173 = vpop.permute.xlu0 %1172
        %1176 = vset.pattern.permute.xlu0 0
        %1177 = vperm.xlu0 %1176, %v1099
        %v1178 = vpop.permute.xlu0 %1177
        %v1180 = vmul.f32 %v823, %v1103
        %v1181 = vmul.f32 %v825, %v1108
        %v1182 = vmul.f32 %v827, %v1113
        %v1183 = vmul.f32 %v829, %v1118
        %v1184 = vmul.f32 %v831, %v1123
        %v1185 = vmul.f32 %v833, %v1128
        %v1186 = vmul.f32 %v835, %v1133
        %v1187 = vmul.f32 %v837, %v1138
        %v1188 = vmul.f32 %v839, %v1143
        %v1189 = vmul.f32 %v841, %v1148
        %v1190 = vmul.f32 %v843, %v1153
        %v1191 = vmul.f32 %v845, %v1158
        %v1192 = vmul.f32 %v847, %v1163
        %v1193 = vmul.f32 %v849, %v1168
        %v1194 = vmul.f32 %v851, %v1173
        %v1195 = vmul.f32 %v853, %v1178
        %v1196 = vadd.f32 %v1180, %v1181
        %v1197 = vadd.f32 %v1196, %v1182
        %v1198 = vadd.f32 %v1197, %v1183
        %v1199 = vadd.f32 %v1198, %v1184
        %v1200 = vadd.f32 %v1199, %v1185
        %v1201 = vadd.f32 %v1200, %v1186
        %v1202 = vadd.f32 %v1201, %v1187
        %v1203 = vadd.f32 %v1202, %v1188
        %v1204 = vadd.f32 %v1203, %v1189
        %v1205 = vadd.f32 %v1204, %v1190
        %v1206 = vadd.f32 %v1205, %v1191
        %v1207 = vadd.f32 %v1206, %v1192
        %v1208 = vadd.f32 %v1207, %v1193
        %v1209 = vadd.f32 %v1208, %v1194
        %v1210 = vadd.f32 %v1209, %v1195
        %v1211 = vrot.slane %v1210, 4
        %v1212 = vadd.f32 %v1210, %v1211
        %v1213 = vrot.slane %v1212, 2
        %v1214 = vadd.f32 %v1212, %v1213
        %v1215 = vrot.slane %v1214, 1
        %v1216 = vadd.f32 %v1214, %v1215
        %s1217 = scalar_lea.vmem [#allocation5], %s25
        %v1218 = vld [vmem:[%s1217] sm:$0x1]
        %1220 = vset.pattern.permute.xlu0 0
        %1221 = vperm.xlu0 %1220, %v1051
        %v1222 = vpop.permute.xlu0 %1221
        %v1224 = vmax.f32 %v1218, %v1222
        %v1225 = vsub.f32 %v1218, %v1224
        %v1226 = vmul.f32 %v1225, 1.442695
        %v1227 = vpow.pop %v1226
        %s1228 = scalar_lea.vmem [#allocation6], %s25
        %v1229 = vld [vmem:[%s1228] sm:$0x1]
        %v1230 = vmul.f32 %v1227, %v1229
        %v1231 = vsub.f32 %v1222, %v1224
        %v1232 = vmul.f32 %v1231, 1.442695
        %v1233 = vpow.pop %v1232
        %v1234 = vmul.f32 %v1216, %v1233
        %v1235 = vadd.f32 %v1230, %v1234
        %1236 = vst [vmem:[%s1228] sm:$0x1] %v1235
        %1237 = vst [vmem:[%s1217] sm:$0x1] %v1224
        %p1238 = scmp.eq.s32.totalorder %s25, 1
        // Predicated region
        $region41: #{_lambda_.1} parent=27 // pred_check
          %p1239 = pneg %p1238
        $region42: #{_lambda_.1} parent=27 // pred_check_branch
          %1241 = sbr.rel (%p1239) target = $region44
        $region43: #{_lambda_.1} parent=27 // pred_region
          %v1242 = vld [vmem:[#allocation2] sm:$0xff]
          %v1243 = vld [vmem:[#allocation2 + $0x8] sm:$0xff]
          %v1244 = vld [vmem:[#allocation2 + $0x10] sm:$0xff]
          %v1245 = vld [vmem:[#allocation2 + $0x18] sm:$0xff]
          %v1246 = vld [vmem:[#allocation2 + $0x20] sm:$0xff]
          %v1247 = vld [vmem:[#allocation2 + $0x28] sm:$0xff]
          %v1248 = vld [vmem:[#allocation2 + $0x30] sm:$0xff]
          %v1249 = vld [vmem:[#allocation2 + $0x38] sm:$0xff]
          %v1250 = vld [vmem:[#allocation2 + $0x40] sm:$0xff]
          %v1251 = vld [vmem:[#allocation2 + $0x48] sm:$0xff]
          %v1252 = vld [vmem:[#allocation2 + $0x50] sm:$0xff]
          %v1253 = vld [vmem:[#allocation2 + $0x58] sm:$0xff]
          %v1254 = vld [vmem:[#allocation2 + $0x60] sm:$0xff]
          %v1255 = vld [vmem:[#allocation2 + $0x68] sm:$0xff]
          %v1256 = vld [vmem:[#allocation2 + $0x70] sm:$0xff]
          %v1257 = vld [vmem:[#allocation2 + $0x78] sm:$0xff]
          %v1258 = vld [vmem:[#allocation3] sm:$0xff]
          %v1259 = vld [vmem:[#allocation3 + $0x8] sm:$0xff]
          %v1260 = vld [vmem:[#allocation3 + $0x10] sm:$0xff]
          %v1261 = vld [vmem:[#allocation3 + $0x18] sm:$0xff]
          %v1262 = vld [vmem:[#allocation3 + $0x20] sm:$0xff]
          %v1263 = vld [vmem:[#allocation3 + $0x28] sm:$0xff]
          %v1264 = vld [vmem:[#allocation3 + $0x30] sm:$0xff]
          %v1265 = vld [vmem:[#allocation3 + $0x38] sm:$0xff]
          %v1266 = vld [vmem:[#allocation3 + $0x40] sm:$0xff]
          %v1267 = vld [vmem:[#allocation3 + $0x48] sm:$0xff]
          %v1268 = vld [vmem:[#allocation3 + $0x50] sm:$0xff]
          %v1269 = vld [vmem:[#allocation3 + $0x58] sm:$0xff]
          %v1270 = vld [vmem:[#allocation3 + $0x60] sm:$0xff]
          %v1271 = vld [vmem:[#allocation3 + $0x68] sm:$0xff]
          %v1272 = vld [vmem:[#allocation3 + $0x70] sm:$0xff]
          %v1273 = vld [vmem:[#allocation3 + $0x78] sm:$0xff]
          %v1274 = vlog2.pop %v1258
          %v1275 = vmul.f32 %v1274, 0.6931472
          %v1276 = vlog2.pop %v1259
          %v1277 = vmul.f32 %v1276, 0.6931472
          %v1278 = vlog2.pop %v1260
          %v1279 = vmul.f32 %v1278, 0.6931472
          %v1280 = vlog2.pop %v1261
          %v1281 = vmul.f32 %v1280, 0.6931472
          %v1282 = vlog2.pop %v1262
          %v1283 = vmul.f32 %v1282, 0.6931472
          %v1284 = vlog2.pop %v1263
          %v1285 = vmul.f32 %v1284, 0.6931472
          %v1286 = vlog2.pop %v1264
          %v1287 = vmul.f32 %v1286, 0.6931472
          %v1288 = vlog2.pop %v1265
          %v1289 = vmul.f32 %v1288, 0.6931472
          %v1290 = vlog2.pop %v1266
          %v1291 = vmul.f32 %v1290, 0.6931472
          %v1292 = vlog2.pop %v1267
          %v1293 = vmul.f32 %v1292, 0.6931472
          %v1294 = vlog2.pop %v1268
          %v1295 = vmul.f32 %v1294, 0.6931472
          %v1296 = vlog2.pop %v1269
          %v1297 = vmul.f32 %v1296, 0.6931472
          %v1298 = vlog2.pop %v1270
          %v1299 = vmul.f32 %v1298, 0.6931472
          %v1300 = vlog2.pop %v1271
          %v1301 = vmul.f32 %v1300, 0.6931472
          %v1302 = vlog2.pop %v1272
          %v1303 = vmul.f32 %v1302, 0.6931472
          %v1304 = vlog2.pop %v1273
          %v1305 = vmul.f32 %v1304, 0.6931472
          %v1306 = vadd.f32 %v1242, %v1275
          %v1307 = vadd.f32 %v1243, %v1277
          %v1308 = vadd.f32 %v1244, %v1279
          %v1309 = vadd.f32 %v1245, %v1281
          %v1310 = vadd.f32 %v1246, %v1283
          %v1311 = vadd.f32 %v1247, %v1285
          %v1312 = vadd.f32 %v1248, %v1287
          %v1313 = vadd.f32 %v1249, %v1289
          %v1314 = vadd.f32 %v1250, %v1291
          %v1315 = vadd.f32 %v1251, %v1293
          %v1316 = vadd.f32 %v1252, %v1295
          %v1317 = vadd.f32 %v1253, %v1297
          %v1318 = vadd.f32 %v1254, %v1299
          %v1319 = vadd.f32 %v1255, %v1301
          %v1320 = vadd.f32 %v1256, %v1303
          %v1321 = vadd.f32 %v1257, %v1305
          %v1322 = vld [vmem:[#allocation4] sm:$0xff]
          %v1323 = vld [vmem:[#allocation4 + $0x8] sm:$0xff]
          %v1324 = vld [vmem:[#allocation4 + $0x10] sm:$0xff]
          %v1325 = vld [vmem:[#allocation4 + $0x18] sm:$0xff]
          %v1326 = vld [vmem:[#allocation4 + $0x20] sm:$0xff]
          %v1327 = vld [vmem:[#allocation4 + $0x28] sm:$0xff]
          %v1328 = vld [vmem:[#allocation4 + $0x30] sm:$0xff]
          %v1329 = vld [vmem:[#allocation4 + $0x38] sm:$0xff]
          %v1330 = vld [vmem:[#allocation4 + $0x40] sm:$0xff]
          %v1331 = vld [vmem:[#allocation4 + $0x48] sm:$0xff]
          %v1332 = vld [vmem:[#allocation4 + $0x50] sm:$0xff]
          %v1333 = vld [vmem:[#allocation4 + $0x58] sm:$0xff]
          %v1334 = vld [vmem:[#allocation4 + $0x60] sm:$0xff]
          %v1335 = vld [vmem:[#allocation4 + $0x68] sm:$0xff]
          %v1336 = vld [vmem:[#allocation4 + $0x70] sm:$0xff]
          %v1337 = vld [vmem:[#allocation4 + $0x78] sm:$0xff]
          %v1338 = vsub.f32 %v1306, %v1322
          %v1339 = vsub.f32 %v1307, %v1323
          %v1340 = vsub.f32 %v1308, %v1324
          %v1341 = vsub.f32 %v1309, %v1325
          %v1342 = vsub.f32 %v1310, %v1326
          %v1343 = vsub.f32 %v1311, %v1327
          %v1344 = vsub.f32 %v1312, %v1328
          %v1345 = vsub.f32 %v1313, %v1329
          %v1346 = vsub.f32 %v1314, %v1330
          %v1347 = vsub.f32 %v1315, %v1331
          %v1348 = vsub.f32 %v1316, %v1332
          %v1349 = vsub.f32 %v1317, %v1333
          %v1350 = vsub.f32 %v1318, %v1334
          %v1351 = vsub.f32 %v1319, %v1335
          %v1352 = vsub.f32 %v1320, %v1336
          %v1353 = vsub.f32 %v1321, %v1337
          %1354 = vst.msk [vmem:[%s245] sm:$0xff] %vm982, %v1338
          %1355 = vst.msk [vmem:[%s245 + $0x8] sm:$0xff] %vm982, %v1339
          %1356 = vst.msk [vmem:[%s245 + $0x10] sm:$0xff] %vm982, %v1340
          %1357 = vst.msk [vmem:[%s245 + $0x18] sm:$0xff] %vm982, %v1341
          %1358 = vst.msk [vmem:[%s245 + $0x20] sm:$0xff] %vm982, %v1342
          %1359 = vst.msk [vmem:[%s245 + $0x28] sm:$0xff] %vm982, %v1343
          %1360 = vst.msk [vmem:[%s245 + $0x30] sm:$0xff] %vm982, %v1344
          %1361 = vst.msk [vmem:[%s245 + $0x38] sm:$0xff] %vm982, %v1345
          %1362 = vst.msk [vmem:[%s245 + $0x40] sm:$0xff] %vm982, %v1346
          %1363 = vst.msk [vmem:[%s245 + $0x48] sm:$0xff] %vm982, %v1347
          %1364 = vst.msk [vmem:[%s245 + $0x50] sm:$0xff] %vm982, %v1348
          %1365 = vst.msk [vmem:[%s245 + $0x58] sm:$0xff] %vm982, %v1349
          %1366 = vst.msk [vmem:[%s245 + $0x60] sm:$0xff] %vm982, %v1350
          %1367 = vst.msk [vmem:[%s245 + $0x68] sm:$0xff] %vm982, %v1351
          %1368 = vst.msk [vmem:[%s245 + $0x70] sm:$0xff] %vm982, %v1352
          %1369 = vst.msk [vmem:[%s245 + $0x78] sm:$0xff] %vm982, %v1353
        $region44: #{_lambda_.1} parent=27 // pred_fallthru
          _
        %p1370 = scmp.eq.s32.totalorder %s24, 1
        // Predicated region
        $region45: #{_lambda_.1} parent=27 // pred_check
          %p1371 = pneg %p1370
        $region46: #{_lambda_.1} parent=27 // pred_check_branch
          %1373 = sbr.rel (%p1371) target = $region48
        $region47: #{_lambda_.1} parent=27 // pred_region
          %v1374 = vld [vmem:[%s1217] sm:$0x1]
          %v1375 = vld [vmem:[%s1228] sm:$0x1]
          %v1376 = vlog2.pop %v1375
          %v1377 = vmul.f32 %v1376, 0.6931472
          %v1378 = vadd.f32 %v1374, %v1377
          %s1379 = scalar_lea.vmem [#allocation7], %s25
          %v1380 = vld [vmem:[%s1379] sm:$0x1]
          %v1381 = vsub.f32 %v1378, %v1380
          %s1382 = scalar_lea.vmem [#allocation10], %s25
          %1383 = vst [vmem:[%s1382] sm:$0x1] %v1381
        $region48: #{_lambda_.1} parent=27 // pred_fallthru
          _
        %s1384 = sand.u32 %s94, 1
        %s1385 = scalar_lea.sflag [#allocation9], %s1384
        %s1386 = sand.u32 %s94, 1
        %s1387 = smul.addr %s1386, 128
        %s1388 = scalar_lea.vmem [#allocation8], %s1387
        %s1389 = smul.u32 16, %s24
        %p1390 = scmp.lt.s32.totalorder %s1389, 31
        %s1391 = scalar_select %p1390, %s1389, 31
        %s1392 = smul.addr %s1391, 8
        %s1393 = scalar_lea.vmem %s3, %s1392
        // Predicated region
        $region49: #{_lambda_.1} parent=27 // pred_check
          %p1394 = pneg %p104
        $region50: #{_lambda_.1} parent=27 // pred_check_branch
          %1396 = sbr.rel (%p1394) target = $region52
        $region51: #{_lambda_.1} parent=27 // pred_region
          %s1397 = smul.u32 16, %s24
          %s1399 = ssub.s32 2048, 2048
          %1400 = vsyncadd %s1385, %s1399
          %s1401 = smul.addr %s1397, 2
          %s1402 = sadd.s32 %s25, %s1401
          %s1403 = smul.addr %s1402, 128
          %s1404 = scalar_lea.hbm %s2, %s1403
          %s1405 = sshll.u32 %s1388, 4
          %s1406 = int_to_ptr.vmem [resolvable:$true] %s1405
          %1411 = dma.vmem_to_hbm [thread:$0]  %s1406, 2048, %s1404, %s1385, 128, 256, 8
        $region52: #{_lambda_.1} parent=27 // pred_fallthru
          _
        // Predicated region
        $region53: #{_lambda_.1} parent=27 // pred_check
          %p1412 = pneg %p130
        $region54: #{_lambda_.1} parent=27 // pred_check_branch
          %1414 = sbr.rel (%p1412) target = $region56
        $region55: #{_lambda_.1} parent=27 // pred_region
          %s1415 = smul.u32 16, %s24
        $region56: #{_lambda_.1} parent=27 // pred_fallthru
          _
        // Predicated region
        $region57: #{_lambda_.1} parent=27 // pred_check
          %p1416 = pneg %p151
        $region58: #{_lambda_.1} parent=27 // pred_check_branch
          %1418 = sbr.rel (%p1416) target = $region60
        $region59: #{_lambda_.1} parent=27 // pred_region
          %s1420 = ssub.s32 32, 32
          %1421 = vsyncadd [#allocation11], %s1420
          %s1422 = sshll.u32 [#allocation10], 4
          %s1423 = int_to_ptr.vmem [resolvable:$true] %s1422
          %1428 = dma.vmem_to_hbm [thread:$0]  %s1423, 32, %s4, [#allocation11], 16, 16, 1
        $region60: #{_lambda_.1} parent=27 // pred_fallthru
          _
        // Predicated region
        $region61: #{_lambda_.1} parent=27 // pred_check
          %p1429 = pneg %p151
        $region62: #{_lambda_.1} parent=27 // pred_check_branch
          %1431 = sbr.rel (%p1429) target = $region64
        $region63: #{_lambda_.1} parent=27 // pred_region
          %1432 = dma.done [#allocation11], 32
        $region64: #{_lambda_.1} parent=27 // pred_fallthru
          _
      $region28: #{_lambda_.1} parent=5 // pred_fallthru
        _
      %p1433 = scmp.le.s32.totalorder 2, %s15
      // Predicated region
      $region65: #{_lambda_.1} parent=5 // pred_check
        %p1434 = pneg %p1433
      $region66: #{_lambda_.1} parent=5 // pred_check_branch
        %1436 = sbr.rel (%p1434) target = $region68
      $region67: #{_lambda_.1} parent=5 // pred_region
        %s1437 = ssub.s32 %s15, 2
        // Predicated region
        $region69: #{_lambda_.1} parent=67 // pred_check
          %p1438 = pneg %p110
        $region70: #{_lambda_.1} parent=67 // pred_check_branch
          %1440 = sbr.rel (%p1438) target = $region72
        $region71: #{_lambda_.1} parent=67 // pred_region
          %s1441 = sand.u32 %s95, 1
          %s1442 = scalar_lea.sflag [#allocation9], %s1441
          %s1443 = sand.u32 %s95, 1
          %s1444 = smul.addr %s1443, 128
          %s1445 = scalar_lea.vmem [#allocation8], %s1444
          %1446 = dma.done %s1442, 2048
        $region72: #{_lambda_.1} parent=67 // pred_fallthru
          _
        // Predicated region
        $region73: #{_lambda_.1} parent=67 // pred_check
          %p1447 = pneg %p136
        $region74: #{_lambda_.1} parent=67 // pred_check_branch
          %1449 = sbr.rel (%p1447) target = $region76
        $region75: #{_lambda_.1} parent=67 // pred_region
          %s1450 = smul.u32 16, %s26
          %p1451 = scmp.lt.s32.totalorder %s1450, 31
          %s1452 = scalar_select %p1451, %s1450, 31
          %s1453 = smul.addr %s1452, 8
          %s1454 = scalar_lea.vmem %s3, %s1453
        $region76: #{_lambda_.1} parent=67 // pred_fallthru
          _
      $region68: #{_lambda_.1} parent=5 // pred_fallthru
        _
    $region6: #{_lambda_.1} parent=1 // loop_footer
      %s19 = sadd.s32 1, %s15
    $region7: #{_lambda_.1} parent=1 // loop_footer_branch
      %14 = sbr.rel target = $region3
    $region8: #{_lambda_.1} parent=1 // loop_exit
      _
    %1455 = vsyncpa [#allocation9], 1
    %s1456 = scalar_lea.sflag [#allocation9], 1
    %1457 = vsyncpa %s1456, 1
    %1458 = vsyncpa [#allocation11], 1

</llo_original>
